<compile_context>
chip_gen: v7x
topology: tpu7x:2x2x1
jax: 0.10.0
libtpu: 0.0.40
codegen_flags: <defaults>
</compile_context>

<pallas_src>
import numpy as np
import jax
import jax.numpy as jnp
from jax import lax
from jax.experimental import pallas as pl
from jax.experimental.pallas import tpu as pltpu

SUBLANE = 8    # f32 sublane tile
LANE = 128     # lane tile


def _round_up(x, m):
    return (x + m - 1) // m * m


def gru_decoder_kernel(x_ref, h0_ref, w_ih_ref, w_hh_ref, b_comb_ref, b_hn_ref,
                       w_out_ref, b_out_ref, recon_ref, hlast_ref,
                       xg_scr, hs_scr, h_scr):
    """One (batch-chunk, time-tile) grid step of the GRU decoder.

    x_ref:     (Tt, Bc, I)        time-major input tile
    h0_ref:    (Bc, Hp)           initial hidden state for this batch chunk
    w_ih_ref:  (I, 3*Hp)          fused input->gates weights [r|z|n], lane-aligned
    w_hh_ref:  (Hp, 3*Hp)         fused hidden->gates weights [r|z|n]
    b_comb_ref:(1, 3*Hp)          [b_ir+b_hr | b_iz+b_hz | b_in]
    b_hn_ref:  (1, Hp)            b_hn (multiplied by r inside the cell)
    w_out_ref: (Hp, Ip)           output Linear weight (pre-transposed, padded)
    b_out_ref: (1, Ip)            output Linear bias (padded)
    recon_ref: (Tt, Bc, Ip)       reconstruction output tile
    hlast_ref: (Bc, Hp)           final hidden state for this batch chunk
    xg_scr:    (Tt, Bc, 3*Hp)     per-tile input projections     (VMEM scratch)
    hs_scr:    (Tt, Bc, Hp)       per-tile hidden states         (VMEM scratch)
    h_scr:     (Bc, Hp)           hidden-state carry across time tiles (scratch)
    """
    Tt, Bc, I = x_ref.shape
    Hp = h0_ref.shape[-1]
    t_idx = pl.program_id(1)
    mxu_dtype = w_ih_ref.dtype

    # Initialize the recurrence carry at the first time tile of each batch chunk.
    @pl.when(t_idx == 0)
    def _():
        h_scr[...] = h0_ref[...]

    # ---- Hoisted input projection for this time tile (one MXU matmul) ----
    # (Tt, Bc, I) -> (Tt*Bc, I) is layout-preserving because Bc % 8 == 0.
    x_flat = x_ref[...].reshape(Tt * Bc, I)
    xg = jnp.dot(x_flat.astype(mxu_dtype), w_ih_ref[...],
                 preferred_element_type=jnp.float32) + b_comb_ref[...]
    xg_scr[...] = xg.reshape(Tt, Bc, 3 * Hp)

    # Weights / biases loaded & broadcast once (outside the serial loop).
    w_hh = w_hh_ref[...]                                   # (Hp, 3*Hp)
    b_hn = jnp.broadcast_to(b_hn_ref[...], (Bc, Hp))       # hoisted broadcast

    def step(t, h):
        xg_t = xg_scr[t]                                                  # (Bc, 3Hp)
        hg = jnp.dot(h.astype(mxu_dtype), w_hh,
                     preferred_element_type=jnp.float32)                  # (Bc, 3Hp)
        # Gate slices are 128-lane aligned (Hp % 128 == 0) -> free vreg picks.
        r = jax.nn.sigmoid(xg_t[:, :Hp] + hg[:, :Hp])
        z = jax.nn.sigmoid(xg_t[:, Hp:2 * Hp] + hg[:, Hp:2 * Hp])
        n = jnp.tanh(xg_t[:, 2 * Hp:] + r * (hg[:, 2 * Hp:] + b_hn))
        h_new = (1.0 - z) * n + z * h
        hs_scr[t] = h_new
        return h_new                                        # carry stays in vregs

    h_last = lax.fori_loop(0, Tt, step, h_scr[...], unroll=min(Tt, 4))
    h_scr[...] = h_last
    hlast_ref[...] = h_last   # resident output block; DMA'd back once per chunk

    # ---- Deferred output Linear for this tile: one matmul + lane-dense store ----
    hs_flat = hs_scr[...].reshape(Tt * Bc, Hp)
    recon = jnp.dot(hs_flat.astype(mxu_dtype), w_out_ref[...],
                    preferred_element_type=jnp.float32) + b_out_ref[...]
    recon_ref[...] = recon.reshape(Tt, Bc, recon_ref.shape[-1]).astype(recon_ref.dtype)


def init_decoder_params(key, n_input, n_hidden):
    """Synthetic params matching torch.nn.GRU / nn.Linear layouts (gate order r,z,n)."""
    ks = jax.random.split(key, 6)
    k = 1.0 / np.sqrt(n_hidden)
    w_ih_t = jax.random.uniform(ks[0], (3, n_hidden, n_input), jnp.float32, -k, k)
    w_hh_t = jax.random.uniform(ks[1], (3, n_hidden, n_hidden), jnp.float32, -k, k)
    b_ih = jax.random.uniform(ks[2], (3, n_hidden), jnp.float32, -k, k)
    b_hh = jax.random.uniform(ks[3], (3, n_hidden), jnp.float32, -k, k)
    w_out_t = jax.random.uniform(ks[4], (n_input, n_hidden), jnp.float32, -k, k)
    b_out = jax.random.uniform(ks[5], (1, n_input), jnp.float32, -k, k)
    return {"w_ih_l0": w_ih_t, "w_hh_l0": w_hh_t, "b_ih_l0": b_ih,
            "b_hh_l0": b_hh, "w_out": w_out_t, "b_out": b_out}


def pack_decoder_params(raw, n_input, n_hidden, mxu_dtype=jnp.bfloat16):
    """Pack torch-style params into lane-aligned fused layouts for the kernel."""
    H, I = n_hidden, n_input
    Hp = _round_up(H, LANE)
    Ip = _round_up(I, LANE)
    w_ih_t, w_hh_t = raw["w_ih_l0"], raw["w_hh_l0"]     # (3,H,I), (3,H,H)
    b_ih, b_hh = raw["b_ih_l0"], raw["b_hh_l0"]         # (3,H)
    w_out_t, b_out = raw["w_out"], raw["b_out"]         # (I,H), (1,I)

    w_ih = jnp.zeros((I, 3 * Hp), jnp.float32)
    w_hh = jnp.zeros((Hp, 3 * Hp), jnp.float32)
    for g in range(3):
        w_ih = w_ih.at[:, g * Hp:g * Hp + H].set(w_ih_t[g].T)
        w_hh = w_hh.at[:H, g * Hp:g * Hp + H].set(w_hh_t[g].T)

    # b_ih (all gates) + b_hh[r,z] folded into the hoisted projection; b_hn kept
    # separate (it is multiplied by r inside the cell).  All lane-aligned.
    b_comb = jnp.zeros((1, 3 * Hp), jnp.float32)
    b_comb = b_comb.at[0, 0:H].set(b_ih[0] + b_hh[0])
    b_comb = b_comb.at[0, Hp:Hp + H].set(b_ih[1] + b_hh[1])
    b_comb = b_comb.at[0, 2 * Hp:2 * Hp + H].set(b_ih[2])
    b_hn = jnp.zeros((1, Hp), jnp.float32).at[0, :H].set(b_hh[2])

    w_out = jnp.zeros((Hp, Ip), jnp.float32).at[:H, :I].set(w_out_t.T)
    b_out_p = jnp.zeros((1, Ip), jnp.float32).at[0, :I].set(b_out[0])

    return {"w_ih": w_ih.astype(mxu_dtype), "w_hh": w_hh.astype(mxu_dtype),
            "b_comb": b_comb, "b_hn": b_hn,
            "w_out": w_out.astype(mxu_dtype), "b_out": b_out_p,
            "n_input": I, "n_hidden": H, "H_pad": Hp, "I_pad": Ip}


def decoder_forward(inputs, hidden, params, t_tile=8):
    """PyTorch-equivalent forward: inputs (B, T, I), hidden (B, H)."""
    B, T, I = inputs.shape
    H, Hp, Ip = params["n_hidden"], params["H_pad"], params["I_pad"]
    Bp = _round_up(B, SUBLANE)

    # Time-tile length must divide T (the recurrence carry must see every step).
    tt = max(d for d in range(1, min(t_tile, T) + 1) if T % d == 0)
    num_t = T // tt
    num_b = Bp // SUBLANE

    # Time-major + batch pad (one fused copy in XLA).
    # TODO(synk): fold this transpose/pad into the input BlockSpec DMA at production sizes.
    x_tm = jnp.zeros((T, Bp, I), jnp.float32).at[:, :B, :].set(
        jnp.transpose(inputs, (1, 0, 2)))
    h0 = jnp.zeros((Bp, Hp), jnp.float32).at[:B, :H].set(hidden)

    recon_pad, h_last_pad = pl.pallas_call(
        gru_decoder_kernel,
        out_shape=(jax.ShapeDtypeStruct((T, Bp, Ip), jnp.float32),
                   jax.ShapeDtypeStruct((Bp, Hp), jnp.float32)),
        grid_spec=pltpu.PrefetchScalarGridSpec(
            num_scalar_prefetch=0,
            grid=(num_b, num_t),            # (batch chunks ||, time tiles serial)
            in_specs=[
                pl.BlockSpec((tt, SUBLANE, I), lambda b, t: (t, b, 0)),   # x
                pl.BlockSpec((SUBLANE, Hp), lambda b, t: (b, 0)),         # h0
                pl.BlockSpec((I, 3 * Hp), lambda b, t: (0, 0)),           # w_ih
                pl.BlockSpec((Hp, 3 * Hp), lambda b, t: (0, 0)),          # w_hh
                pl.BlockSpec((1, 3 * Hp), lambda b, t: (0, 0)),           # b_comb
                pl.BlockSpec((1, Hp), lambda b, t: (0, 0)),               # b_hn
                pl.BlockSpec((Hp, Ip), lambda b, t: (0, 0)),              # w_out
                pl.BlockSpec((1, Ip), lambda b, t: (0, 0)),               # b_out
            ],
            out_specs=[
                pl.BlockSpec((tt, SUBLANE, Ip), lambda b, t: (t, b, 0)),  # recon
                pl.BlockSpec((SUBLANE, Hp), lambda b, t: (b, 0)),         # h_last
            ],
            scratch_shapes=[
                pltpu.VMEM((tt, SUBLANE, 3 * Hp), jnp.float32),  # x projections
                pltpu.VMEM((tt, SUBLANE, Hp), jnp.float32),      # hidden states
                pltpu.VMEM((SUBLANE, Hp), jnp.float32),          # carry across tiles
            ]),
        compiler_params=pltpu.CompilerParams(
            dimension_semantics=("parallel", "arbitrary"),
            vmem_limit_bytes=32 * 1024 * 1024),
    )(x_tm, h0, params["w_ih"], params["w_hh"], params["b_comb"],
      params["b_hn"], params["w_out"], params["b_out"])

    reconstruction = jnp.transpose(recon_pad[:, :B, :I], (1, 0, 2))   # (B, T, I)
    fcn_latent = h_last_pad[:B, :H][None, :, :]                       # (1, B, H)
    return reconstruction, fcn_latent


def decoder_forward_ref(inputs, hidden, raw):
    """Pure-JAX unfused reference (torch.nn.GRU math) for correctness."""
    w_ih_t, w_hh_t = raw["w_ih_l0"], raw["w_hh_l0"]
    b_ih, b_hh = raw["b_ih_l0"], raw["b_hh_l0"]
    w_out_t, b_out = raw["w_out"], raw["b_out"]

    def step(h, x_t):
        r = jax.nn.sigmoid(x_t @ w_ih_t[0].T + b_ih[0] + h @ w_hh_t[0].T + b_hh[0])
        z = jax.nn.sigmoid(x_t @ w_ih_t[1].T + b_ih[1] + h @ w_hh_t[1].T + b_hh[1])
        n = jnp.tanh(x_t @ w_ih_t[2].T + b_ih[2] + r * (h @ w_hh_t[2].T + b_hh[2]))
        h_new = (1.0 - z) * n + z * h
        return h_new, h_new

    x_tm = jnp.transpose(inputs, (1, 0, 2))
    h_last, hs = lax.scan(step, hidden, x_tm)
    output = jnp.transpose(hs, (1, 0, 2))
    reconstruction = output @ w_out_t.T + b_out
    return reconstruction, h_last[None, :, :]


if __name__ == "__main__":
    B, T, n_input, n_hidden = 2, 8, 4, 32

    key = jax.random.PRNGKey(0)
    k_x, k_h, k_p = jax.random.split(key, 3)
    inputs = jax.random.normal(k_x, (B, T, n_input), jnp.float32)
    hidden = jax.random.normal(k_h, (B, n_hidden), jnp.float32)
    raw = init_decoder_params(k_p, n_input, n_hidden)

    recon_ref, latent_ref = decoder_forward_ref(inputs, hidden, raw)

    # ---- Strict f32 correctness mode (exercises the grid/carry/padding path) ----
    params_f32 = pack_decoder_params(raw, n_input, n_hidden, mxu_dtype=jnp.float32)
    recon_f32, latent_f32 = decoder_forward(inputs, hidden, params_f32, t_tile=4)
    jax.block_until_ready((recon_f32, latent_f32))
    np.testing.assert_allclose(np.asarray(recon_f32), np.asarray(recon_ref),
                               rtol=1e-4, atol=1e-5)
    np.testing.assert_allclose(np.asarray(latent_f32), np.asarray(latent_ref),
                               rtol=1e-4, atol=1e-5)

    # ---- bf16-MXU fast path (default for production); looser tolerance ----
    params_bf16 = pack_decoder_params(raw, n_input, n_hidden, mxu_dtype=jnp.bfloat16)
    recon_bf, latent_bf = decoder_forward(inputs, hidden, params_bf16, t_tile=4)
    jax.block_until_ready((recon_bf, latent_bf))
    np.testing.assert_allclose(np.asarray(recon_bf), np.asarray(recon_ref),
                               rtol=3e-2, atol=3e-2)
    np.testing.assert_allclose(np.asarray(latent_bf), np.asarray(latent_ref),
                               rtol=3e-2, atol=3e-2)

    assert recon_bf.shape == (B, T, n_input)
    assert latent_bf.shape == (1, B, n_hidden)

    print("KERNEL_OK")
</pallas_src>

<mosaic_0001>
module attributes {stable_mosaic.version = 11 : i64} {
  func.func @gru_decoder_kernel(%arg0: i32, %arg1: i32, %arg2: memref<4x8x4xf32, #tpu.memory_space<vmem>>, %arg3: memref<8x128xf32, #tpu.memory_space<vmem>>, %arg4: memref<4x384xf32, #tpu.memory_space<vmem>>, %arg5: memref<128x384xf32, #tpu.memory_space<vmem>>, %arg6: memref<1x384xf32, #tpu.memory_space<vmem>>, %arg7: memref<1x128xf32, #tpu.memory_space<vmem>>, %arg8: memref<128x128xf32, #tpu.memory_space<vmem>>, %arg9: memref<1x128xf32, #tpu.memory_space<vmem>>, %arg10: memref<4x8x128xf32, #tpu.memory_space<vmem>>, %arg11: memref<8x128xf32, #tpu.memory_space<vmem>>, %arg12: memref<4x8x384xf32, #tpu.memory_space<vmem>>, %arg13: memref<4x8x128xf32, #tpu.memory_space<vmem>>, %arg14: memref<8x128xf32, #tpu.memory_space<vmem>>) attributes {dimension_semantics = [#tpu.dimension_semantics<parallel>, #tpu.dimension_semantics<arbitrary>], iteration_bounds = array<i64: 1, 2>, scalar_prefetch = 0 : i64, scratch_operands = 3 : i64, tpu.core_type = #tpu.core_type<tc>, window_params = [{transform_indices = @transform_0, window_bounds = array<i64: 4, 8, 4>}, {transform_indices = @transform_1, window_bounds = array<i64: 8, 128>}, {pipeline_mode = #tpu.pipeline_mode<synchronous>, transform_indices = @transform_2, window_bounds = array<i64: 4, 384>}, {pipeline_mode = #tpu.pipeline_mode<synchronous>, transform_indices = @transform_3, window_bounds = array<i64: 128, 384>}, {pipeline_mode = #tpu.pipeline_mode<synchronous>, transform_indices = @transform_4, window_bounds = array<i64: 1, 384>}, {pipeline_mode = #tpu.pipeline_mode<synchronous>, transform_indices = @transform_5, window_bounds = array<i64: 1, 128>}, {pipeline_mode = #tpu.pipeline_mode<synchronous>, transform_indices = @transform_6, window_bounds = array<i64: 128, 128>}, {pipeline_mode = #tpu.pipeline_mode<synchronous>, transform_indices = @transform_7, window_bounds = array<i64: 1, 128>}, {transform_indices = @transform_8, window_bounds = array<i64: 4, 8, 128>}, {transform_indices = @transform_9, window_bounds = array<i64: 8, 128>}]} {
    %c0_i32 = arith.constant 0 : i32
    %0 = arith.cmpi eq, %arg1, %c0_i32 : i32
    %1 = arith.extui %0 : i1 to i32
    %c0_i32_0 = arith.constant 0 : i32
    %2 = arith.cmpi ne, %1, %c0_i32_0 : i32
    scf.if %2 {
      %c0_64 = arith.constant 0 : index
      %c0_65 = arith.constant 0 : index
      %168 = vector.load %arg3[%c0_64, %c0_65] : memref<8x128xf32, #tpu.memory_space<vmem>>, vector<8x128xf32>
      %c0_66 = arith.constant 0 : index
      %c0_67 = arith.constant 0 : index
      %169 = vector.load %arg14[%c0_66, %c0_67] : memref<8x128xf32, #tpu.memory_space<vmem>>, vector<8x128xf32>
      tpu.vector_store %arg14[%c0_66, %c0_67], %168 {strides = array<i32>} : memref<8x128xf32, #tpu.memory_space<vmem>>, vector<8x128xf32>,
    } else {
    }
    %c0 = arith.constant 0 : index
    %c0_1 = arith.constant 0 : index
    %c0_2 = arith.constant 0 : index
    %3 = vector.load %arg2[%c0, %c0_1, %c0_2] : memref<4x8x4xf32, #tpu.memory_space<vmem>>, vector<4x8x4xf32>
    %4 = vector.shape_cast %3 : vector<4x8x4xf32> to vector<32x4xf32>
    %c0_3 = arith.constant 0 : index
    %c0_4 = arith.constant 0 : index
    %5 = vector.load %arg4[%c0_3, %c0_4] : memref<4x384xf32, #tpu.memory_space<vmem>>, vector<4x384xf32>
    %cst = arith.constant dense<0.000000e+00> : vector<32x384xf32>
    %6 = tpu.matmul %4, %5, %cst {dimension_numbers = #tpu.dot_dimension_numbers<[1], [0], [0], [1], [0, 0, 1, 1], [], []>} : vector<32x4xf32>, vector<4x384xf32>, vector<32x384xf32> -> vector<32x384xf32>
    %c0_5 = arith.constant 0 : index
    %c0_6 = arith.constant 0 : index
    %7 = vector.load %arg6[%c0_5, %c0_6] : memref<1x384xf32, #tpu.memory_space<vmem>>, vector<1x384xf32>
    %8 = vector.broadcast %7 : vector<1x384xf32> to vector<32x384xf32>
    %9 = arith.addf %6, %8 : vector<32x384xf32>
    %10 = vector.shape_cast %9 : vector<32x384xf32> to vector<4x8x384xf32>
    %c0_7 = arith.constant 0 : index
    %c0_8 = arith.constant 0 : index
    %c0_9 = arith.constant 0 : index
    %11 = vector.load %arg12[%c0_7, %c0_8, %c0_9] : memref<4x8x384xf32, #tpu.memory_space<vmem>>, vector<4x8x384xf32>
    tpu.vector_store %arg12[%c0_7, %c0_8, %c0_9], %10 {strides = array<i32>} : memref<4x8x384xf32, #tpu.memory_space<vmem>>, vector<4x8x384xf32>,
    %c0_10 = arith.constant 0 : index
    %c0_11 = arith.constant 0 : index
    %12 = vector.load %arg5[%c0_10, %c0_11] : memref<128x384xf32, #tpu.memory_space<vmem>>, vector<128x384xf32>
    %c0_12 = arith.constant 0 : index
    %c0_13 = arith.constant 0 : index
    %13 = vector.load %arg7[%c0_12, %c0_13] : memref<1x128xf32, #tpu.memory_space<vmem>>, vector<1x128xf32>
    %14 = vector.shape_cast %13 : vector<1x128xf32> to vector<1x128xf32>
    %15 = vector.broadcast %14 : vector<1x128xf32> to vector<8x128xf32>
    %c0_14 = arith.constant 0 : index
    %c0_15 = arith.constant 0 : index
    %16 = vector.load %arg14[%c0_14, %c0_15] : memref<8x128xf32, #tpu.memory_space<vmem>>, vector<8x128xf32>
    %c0_i32_16 = arith.constant 0 : i32
    %17 = arith.index_cast %c0_i32_16 : i32 to index
    %c0_17 = arith.constant 0 : index
    %c0_18 = arith.constant 0 : index
    %18 = vector.load %arg12[%17, %c0_17, %c0_18] : memref<4x8x384xf32, #tpu.memory_space<vmem>>, vector<1x8x384xf32>
    %19 = vector.shape_cast %18 : vector<1x8x384xf32> to vector<8x384xf32>
    %cst_19 = arith.constant dense<0.000000e+00> : vector<8x384xf32>
    %20 = tpu.matmul %16, %12, %cst_19 {dimension_numbers = #tpu.dot_dimension_numbers<[1], [0], [0], [1], [0, 0, 1, 1], [], []>} : vector<8x128xf32>, vector<128x384xf32>, vector<8x384xf32> -> vector<8x384xf32>
    %21 = vector.extract_strided_slice %19 {offsets = [0, 0], sizes = [8, 128], strides = [1, 1]} : vector<8x384xf32> to vector<8x128xf32>
    %22 = vector.extract_strided_slice %20 {offsets = [0, 0], sizes = [8, 128], strides = [1, 1]} : vector<8x384xf32> to vector<8x128xf32>
    %23 = arith.addf %21, %22 : vector<8x128xf32>
    %24 = arith.negf %23 : vector<8x128xf32>
    %25 = math.exp %24 : vector<8x128xf32>
    %cst_20 = arith.constant 1.000000e+00 : f32
    %26 = vector.broadcast %cst_20 : f32 to vector<8x128xf32>
    %27 = arith.addf %26, %25 : vector<8x128xf32>
    %28 = arith.divf %26, %27 : vector<8x128xf32>
    %29 = vector.extract_strided_slice %19 {offsets = [0, 128], sizes = [8, 128], strides = [1, 1]} : vector<8x384xf32> to vector<8x128xf32>
    %30 = vector.extract_strided_slice %20 {offsets = [0, 128], sizes = [8, 128], strides = [1, 1]} : vector<8x384xf32> to vector<8x128xf32>
    %31 = arith.addf %29, %30 : vector<8x128xf32>
    %32 = arith.negf %31 : vector<8x128xf32>
    %33 = math.exp %32 : vector<8x128xf32>
    %cst_21 = arith.constant 1.000000e+00 : f32
    %34 = vector.broadcast %cst_21 : f32 to vector<8x128xf32>
    %35 = arith.addf %34, %33 : vector<8x128xf32>
    %36 = arith.divf %34, %35 : vector<8x128xf32>
    %37 = vector.extract_strided_slice %19 {offsets = [0, 256], sizes = [8, 128], strides = [1, 1]} : vector<8x384xf32> to vector<8x128xf32>
    %38 = vector.extract_strided_slice %20 {offsets = [0, 256], sizes = [8, 128], strides = [1, 1]} : vector<8x384xf32> to vector<8x128xf32>
    %39 = arith.addf %38, %15 : vector<8x128xf32>
    %40 = arith.mulf %28, %39 : vector<8x128xf32>
    %41 = arith.addf %37, %40 : vector<8x128xf32>
    %42 = math.tanh %41 : vector<8x128xf32>
    %cst_22 = arith.constant 1.000000e+00 : f32
    %43 = vector.broadcast %cst_22 : f32 to vector<8x128xf32>
    %44 = arith.subf %43, %36 : vector<8x128xf32>
    %45 = arith.mulf %44, %42 : vector<8x128xf32>
    %46 = arith.mulf %36, %16 : vector<8x128xf32>
    %47 = arith.addf %45, %46 : vector<8x128xf32>
    %48 = arith.index_cast %c0_i32_16 : i32 to index
    %c0_23 = arith.constant 0 : index
    %c0_24 = arith.constant 0 : index
    %49 = vector.load %arg13[%48, %c0_23, %c0_24] : memref<4x8x128xf32, #tpu.memory_space<vmem>>, vector<1x8x128xf32>
    %50 = vector.shape_cast %49 : vector<1x8x128xf32> to vector<8x128xf32>
    %51 = vector.shape_cast %47 : vector<8x128xf32> to vector<1x8x128xf32>
    tpu.vector_store %arg13[%48, %c0_23, %c0_24], %51 {strides = array<i32>} : memref<4x8x128xf32, #tpu.memory_space<vmem>>, vector<1x8x128xf32>,
    %c1_i32 = arith.constant 1 : i32
    %52 = arith.index_cast %c1_i32 : i32 to index
    %c0_25 = arith.constant 0 : index
    %c0_26 = arith.constant 0 : index
    %53 = vector.load %arg12[%52, %c0_25, %c0_26] : memref<4x8x384xf32, #tpu.memory_space<vmem>>, vector<1x8x384xf32>
    %54 = vector.shape_cast %53 : vector<1x8x384xf32> to vector<8x384xf32>
    %cst_27 = arith.constant dense<0.000000e+00> : vector<8x384xf32>
    %55 = tpu.matmul %47, %12, %cst_27 {dimension_numbers = #tpu.dot_dimension_numbers<[1], [0], [0], [1], [0, 0, 1, 1], [], []>} : vector<8x128xf32>, vector<128x384xf32>, vector<8x384xf32> -> vector<8x384xf32>
    %56 = vector.extract_strided_slice %54 {offsets = [0, 0], sizes = [8, 128], strides = [1, 1]} : vector<8x384xf32> to vector<8x128xf32>
    %57 = vector.extract_strided_slice %55 {offsets = [0, 0], sizes = [8, 128], strides = [1, 1]} : vector<8x384xf32> to vector<8x128xf32>
    %58 = arith.addf %56, %57 : vector<8x128xf32>
    %59 = arith.negf %58 : vector<8x128xf32>
    %60 = math.exp %59 : vector<8x128xf32>
    %cst_28 = arith.constant 1.000000e+00 : f32
    %61 = vector.broadcast %cst_28 : f32 to vector<8x128xf32>
    %62 = arith.addf %61, %60 : vector<8x128xf32>
    %63 = arith.divf %61, %62 : vector<8x128xf32>
    %64 = vector.extract_strided_slice %54 {offsets = [0, 128], sizes = [8, 128], strides = [1, 1]} : vector<8x384xf32> to vector<8x128xf32>
    %65 = vector.extract_strided_slice %55 {offsets = [0, 128], sizes = [8, 128], strides = [1, 1]} : vector<8x384xf32> to vector<8x128xf32>
    %66 = arith.addf %64, %65 : vector<8x128xf32>
    %67 = arith.negf %66 : vector<8x128xf32>
    %68 = math.exp %67 : vector<8x128xf32>
    %cst_29 = arith.constant 1.000000e+00 : f32
    %69 = vector.broadcast %cst_29 : f32 to vector<8x128xf32>
    %70 = arith.addf %69, %68 : vector<8x128xf32>
    %71 = arith.divf %69, %70 : vector<8x128xf32>
    %72 = vector.extract_strided_slice %54 {offsets = [0, 256], sizes = [8, 128], strides = [1, 1]} : vector<8x384xf32> to vector<8x128xf32>
    %73 = vector.extract_strided_slice %55 {offsets = [0, 256], sizes = [8, 128], strides = [1, 1]} : vector<8x384xf32> to vector<8x128xf32>
    %74 = arith.addf %73, %15 : vector<8x128xf32>
    %75 = arith.mulf %63, %74 : vector<8x128xf32>
    %76 = arith.addf %72, %75 : vector<8x128xf32>
    %77 = math.tanh %76 : vector<8x128xf32>
    %cst_30 = arith.constant 1.000000e+00 : f32
    %78 = vector.broadcast %cst_30 : f32 to vector<8x128xf32>
    %79 = arith.subf %78, %71 : vector<8x128xf32>
    %80 = arith.mulf %79, %77 : vector<8x128xf32>
    %81 = arith.mulf %71, %47 : vector<8x128xf32>
    %82 = arith.addf %80, %81 : vector<8x128xf32>
    %83 = arith.index_cast %c1_i32 : i32 to index
    %c0_31 = arith.constant 0 : index
    %c0_32 = arith.constant 0 : index
    %84 = vector.load %arg13[%83, %c0_31, %c0_32] : memref<4x8x128xf32, #tpu.memory_space<vmem>>, vector<1x8x128xf32>
    %85 = vector.shape_cast %84 : vector<1x8x128xf32> to vector<8x128xf32>
    %86 = vector.shape_cast %82 : vector<8x128xf32> to vector<1x8x128xf32>
    tpu.vector_store %arg13[%83, %c0_31, %c0_32], %86 {strides = array<i32>} : memref<4x8x128xf32, #tpu.memory_space<vmem>>, vector<1x8x128xf32>,
    %c2_i32 = arith.constant 2 : i32
    %87 = arith.index_cast %c2_i32 : i32 to index
    %c0_33 = arith.constant 0 : index
    %c0_34 = arith.constant 0 : index
    %88 = vector.load %arg12[%87, %c0_33, %c0_34] : memref<4x8x384xf32, #tpu.memory_space<vmem>>, vector<1x8x384xf32>
    %89 = vector.shape_cast %88 : vector<1x8x384xf32> to vector<8x384xf32>
    %cst_35 = arith.constant dense<0.000000e+00> : vector<8x384xf32>
    %90 = tpu.matmul %82, %12, %cst_35 {dimension_numbers = #tpu.dot_dimension_numbers<[1], [0], [0], [1], [0, 0, 1, 1], [], []>} : vector<8x128xf32>, vector<128x384xf32>, vector<8x384xf32> -> vector<8x384xf32>
    %91 = vector.extract_strided_slice %89 {offsets = [0, 0], sizes = [8, 128], strides = [1, 1]} : vector<8x384xf32> to vector<8x128xf32>
    %92 = vector.extract_strided_slice %90 {offsets = [0, 0], sizes = [8, 128], strides = [1, 1]} : vector<8x384xf32> to vector<8x128xf32>
    %93 = arith.addf %91, %92 : vector<8x128xf32>
    %94 = arith.negf %93 : vector<8x128xf32>
    %95 = math.exp %94 : vector<8x128xf32>
    %cst_36 = arith.constant 1.000000e+00 : f32
    %96 = vector.broadcast %cst_36 : f32 to vector<8x128xf32>
    %97 = arith.addf %96, %95 : vector<8x128xf32>
    %98 = arith.divf %96, %97 : vector<8x128xf32>
    %99 = vector.extract_strided_slice %89 {offsets = [0, 128], sizes = [8, 128], strides = [1, 1]} : vector<8x384xf32> to vector<8x128xf32>
    %100 = vector.extract_strided_slice %90 {offsets = [0, 128], sizes = [8, 128], strides = [1, 1]} : vector<8x384xf32> to vector<8x128xf32>
    %101 = arith.addf %99, %100 : vector<8x128xf32>
    %102 = arith.negf %101 : vector<8x128xf32>
    %103 = math.exp %102 : vector<8x128xf32>
    %cst_37 = arith.constant 1.000000e+00 : f32
    %104 = vector.broadcast %cst_37 : f32 to vector<8x128xf32>
    %105 = arith.addf %104, %103 : vector<8x128xf32>
    %106 = arith.divf %104, %105 : vector<8x128xf32>
    %107 = vector.extract_strided_slice %89 {offsets = [0, 256], sizes = [8, 128], strides = [1, 1]} : vector<8x384xf32> to vector<8x128xf32>
    %108 = vector.extract_strided_slice %90 {offsets = [0, 256], sizes = [8, 128], strides = [1, 1]} : vector<8x384xf32> to vector<8x128xf32>
    %109 = arith.addf %108, %15 : vector<8x128xf32>
    %110 = arith.mulf %98, %109 : vector<8x128xf32>
    %111 = arith.addf %107, %110 : vector<8x128xf32>
    %112 = math.tanh %111 : vector<8x128xf32>
    %cst_38 = arith.constant 1.000000e+00 : f32
    %113 = vector.broadcast %cst_38 : f32 to vector<8x128xf32>
    %114 = arith.subf %113, %106 : vector<8x128xf32>
    %115 = arith.mulf %114, %112 : vector<8x128xf32>
    %116 = arith.mulf %106, %82 : vector<8x128xf32>
    %117 = arith.addf %115, %116 : vector<8x128xf32>
    %118 = arith.index_cast %c2_i32 : i32 to index
    %c0_39 = arith.constant 0 : index
    %c0_40 = arith.constant 0 : index
    %119 = vector.load %arg13[%118, %c0_39, %c0_40] : memref<4x8x128xf32, #tpu.memory_space<vmem>>, vector<1x8x128xf32>
    %120 = vector.shape_cast %119 : vector<1x8x128xf32> to vector<8x128xf32>
    %121 = vector.shape_cast %117 : vector<8x128xf32> to vector<1x8x128xf32>
    tpu.vector_store %arg13[%118, %c0_39, %c0_40], %121 {strides = array<i32>} : memref<4x8x128xf32, #tpu.memory_space<vmem>>, vector<1x8x128xf32>,
    %c3_i32 = arith.constant 3 : i32
    %122 = arith.index_cast %c3_i32 : i32 to index
    %c0_41 = arith.constant 0 : index
    %c0_42 = arith.constant 0 : index
    %123 = vector.load %arg12[%122, %c0_41, %c0_42] : memref<4x8x384xf32, #tpu.memory_space<vmem>>, vector<1x8x384xf32>
    %124 = vector.shape_cast %123 : vector<1x8x384xf32> to vector<8x384xf32>
    %cst_43 = arith.constant dense<0.000000e+00> : vector<8x384xf32>
    %125 = tpu.matmul %117, %12, %cst_43 {dimension_numbers = #tpu.dot_dimension_numbers<[1], [0], [0], [1], [0, 0, 1, 1], [], []>} : vector<8x128xf32>, vector<128x384xf32>, vector<8x384xf32> -> vector<8x384xf32>
    %126 = vector.extract_strided_slice %124 {offsets = [0, 0], sizes = [8, 128], strides = [1, 1]} : vector<8x384xf32> to vector<8x128xf32>
    %127 = vector.extract_strided_slice %125 {offsets = [0, 0], sizes = [8, 128], strides = [1, 1]} : vector<8x384xf32> to vector<8x128xf32>
    %128 = arith.addf %126, %127 : vector<8x128xf32>
    %129 = arith.negf %128 : vector<8x128xf32>
    %130 = math.exp %129 : vector<8x128xf32>
    %cst_44 = arith.constant 1.000000e+00 : f32
    %131 = vector.broadcast %cst_44 : f32 to vector<8x128xf32>
    %132 = arith.addf %131, %130 : vector<8x128xf32>
    %133 = arith.divf %131, %132 : vector<8x128xf32>
    %134 = vector.extract_strided_slice %124 {offsets = [0, 128], sizes = [8, 128], strides = [1, 1]} : vector<8x384xf32> to vector<8x128xf32>
    %135 = vector.extract_strided_slice %125 {offsets = [0, 128], sizes = [8, 128], strides = [1, 1]} : vector<8x384xf32> to vector<8x128xf32>
    %136 = arith.addf %134, %135 : vector<8x128xf32>
    %137 = arith.negf %136 : vector<8x128xf32>
    %138 = math.exp %137 : vector<8x128xf32>
    %cst_45 = arith.constant 1.000000e+00 : f32
    %139 = vector.broadcast %cst_45 : f32 to vector<8x128xf32>
    %140 = arith.addf %139, %138 : vector<8x128xf32>
    %141 = arith.divf %139, %140 : vector<8x128xf32>
    %142 = vector.extract_strided_slice %124 {offsets = [0, 256], sizes = [8, 128], strides = [1, 1]} : vector<8x384xf32> to vector<8x128xf32>
    %143 = vector.extract_strided_slice %125 {offsets = [0, 256], sizes = [8, 128], strides = [1, 1]} : vector<8x384xf32> to vector<8x128xf32>
    %144 = arith.addf %143, %15 : vector<8x128xf32>
    %145 = arith.mulf %133, %144 : vector<8x128xf32>
    %146 = arith.addf %142, %145 : vector<8x128xf32>
    %147 = math.tanh %146 : vector<8x128xf32>
    %cst_46 = arith.constant 1.000000e+00 : f32
    %148 = vector.broadcast %cst_46 : f32 to vector<8x128xf32>
    %149 = arith.subf %148, %141 : vector<8x128xf32>
    %150 = arith.mulf %149, %147 : vector<8x128xf32>
    %151 = arith.mulf %141, %117 : vector<8x128xf32>
    %152 = arith.addf %150, %151 : vector<8x128xf32>
    %153 = arith.index_cast %c3_i32 : i32 to index
    %c0_47 = arith.constant 0 : index
    %c0_48 = arith.constant 0 : index
    %154 = vector.load %arg13[%153, %c0_47, %c0_48] : memref<4x8x128xf32, #tpu.memory_space<vmem>>, vector<1x8x128xf32>
    %155 = vector.shape_cast %154 : vector<1x8x128xf32> to vector<8x128xf32>
    %156 = vector.shape_cast %152 : vector<8x128xf32> to vector<1x8x128xf32>
    tpu.vector_store %arg13[%153, %c0_47, %c0_48], %156 {strides = array<i32>} : memref<4x8x128xf32, #tpu.memory_space<vmem>>, vector<1x8x128xf32>,
    %c4_i32 = arith.constant 4 : i32
    %c0_49 = arith.constant 0 : index
    %c0_50 = arith.constant 0 : index
    %157 = vector.load %arg14[%c0_49, %c0_50] : memref<8x128xf32, #tpu.memory_space<vmem>>, vector<8x128xf32>
    tpu.vector_store %arg14[%c0_49, %c0_50], %152 {strides = array<i32>} : memref<8x128xf32, #tpu.memory_space<vmem>>, vector<8x128xf32>,
    %c0_51 = arith.constant 0 : index
    %c0_52 = arith.constant 0 : index
    %158 = vector.load %arg11[%c0_51, %c0_52] : memref<8x128xf32, #tpu.memory_space<vmem>>, vector<8x128xf32>
    tpu.vector_store %arg11[%c0_51, %c0_52], %152 {strides = array<i32>} : memref<8x128xf32, #tpu.memory_space<vmem>>, vector<8x128xf32>,
    %c0_53 = arith.constant 0 : index
    %c0_54 = arith.constant 0 : index
    %c0_55 = arith.constant 0 : index
    %159 = vector.load %arg13[%c0_53, %c0_54, %c0_55] : memref<4x8x128xf32, #tpu.memory_space<vmem>>, vector<4x8x128xf32>
    %160 = vector.shape_cast %159 : vector<4x8x128xf32> to vector<32x128xf32>
    %c0_56 = arith.constant 0 : index
    %c0_57 = arith.constant 0 : index
    %161 = vector.load %arg8[%c0_56, %c0_57] : memref<128x128xf32, #tpu.memory_space<vmem>>, vector<128x128xf32>
    %cst_58 = arith.constant dense<0.000000e+00> : vector<32x128xf32>
    %162 = tpu.matmul %160, %161, %cst_58 {dimension_numbers = #tpu.dot_dimension_numbers<[1], [0], [0], [1], [0, 0, 1, 1], [], []>} : vector<32x128xf32>, vector<128x128xf32>, vector<32x128xf32> -> vector<32x128xf32>
    %c0_59 = arith.constant 0 : index
    %c0_60 = arith.constant 0 : index
    %163 = vector.load %arg9[%c0_59, %c0_60] : memref<1x128xf32, #tpu.memory_space<vmem>>, vector<1x128xf32>
    %164 = vector.broadcast %163 : vector<1x128xf32> to vector<32x128xf32>
    %165 = arith.addf %162, %164 : vector<32x128xf32>
    %166 = vector.shape_cast %165 : vector<32x128xf32> to vector<4x8x128xf32>
    %c0_61 = arith.constant 0 : index
    %c0_62 = arith.constant 0 : index
    %c0_63 = arith.constant 0 : index
    %167 = vector.load %arg10[%c0_61, %c0_62, %c0_63] : memref<4x8x128xf32, #tpu.memory_space<vmem>>, vector<4x8x128xf32>
    tpu.vector_store %arg10[%c0_61, %c0_62, %c0_63], %166 {strides = array<i32>} : memref<4x8x128xf32, #tpu.memory_space<vmem>>, vector<4x8x128xf32>,
    return
  }
  func.func @transform_0(%arg0: i32, %arg1: i32) -> (i32, i32, i32) {
    %c0_i32 = arith.constant 0 : i32
    %c0_i32_0 = arith.constant 0 : i32
    return %arg1, %arg0, %c0_i32 : i32, i32, i32
  }
  func.func @transform_1(%arg0: i32, %arg1: i32) -> (i32, i32) {
    %c0_i32 = arith.constant 0 : i32
    %c0_i32_0 = arith.constant 0 : i32
    return %arg0, %c0_i32 : i32, i32
  }
  func.func @transform_2(%arg0: i32, %arg1: i32) -> (i32, i32) {
    %c0_i32 = arith.constant 0 : i32
    %c0_i32_0 = arith.constant 0 : i32
    %c0_i32_1 = arith.constant 0 : i32
    return %c0_i32, %c0_i32_0 : i32, i32
  }
  func.func @transform_3(%arg0: i32, %arg1: i32) -> (i32, i32) {
    %c0_i32 = arith.constant 0 : i32
    %c0_i32_0 = arith.constant 0 : i32
    %c0_i32_1 = arith.constant 0 : i32
    return %c0_i32, %c0_i32_0 : i32, i32
  }
  func.func @transform_4(%arg0: i32, %arg1: i32) -> (i32, i32) {
    %c0_i32 = arith.constant 0 : i32
    %c0_i32_0 = arith.constant 0 : i32
    %c0_i32_1 = arith.constant 0 : i32
    return %c0_i32, %c0_i32_0 : i32, i32
  }
  func.func @transform_5(%arg0: i32, %arg1: i32) -> (i32, i32) {
    %c0_i32 = arith.constant 0 : i32
    %c0_i32_0 = arith.constant 0 : i32
    %c0_i32_1 = arith.constant 0 : i32
    return %c0_i32, %c0_i32_0 : i32, i32
  }
  func.func @transform_6(%arg0: i32, %arg1: i32) -> (i32, i32) {
    %c0_i32 = arith.constant 0 : i32
    %c0_i32_0 = arith.constant 0 : i32
    %c0_i32_1 = arith.constant 0 : i32
    return %c0_i32, %c0_i32_0 : i32, i32
  }
  func.func @transform_7(%arg0: i32, %arg1: i32) -> (i32, i32) {
    %c0_i32 = arith.constant 0 : i32
    %c0_i32_0 = arith.constant 0 : i32
    %c0_i32_1 = arith.constant 0 : i32
    return %c0_i32, %c0_i32_0 : i32, i32
  }
  func.func @transform_8(%arg0: i32, %arg1: i32) -> (i32, i32, i32) {
    %c0_i32 = arith.constant 0 : i32
    %c0_i32_0 = arith.constant 0 : i32
    return %arg1, %arg0, %c0_i32 : i32, i32, i32
  }
  func.func @transform_9(%arg0: i32, %arg1: i32) -> (i32, i32) {
    %c0_i32 = arith.constant 0 : i32
    %c0_i32_0 = arith.constant 0 : i32
    return %arg0, %c0_i32 : i32, i32
  }
}

</mosaic_0001>

<llo_original>
// kernel: tpu_custom_call.1
$region0: #{tpu_custom_call.1}
  #allocation0 [shape = 'u32[]', space=smem, size = 0x4, offset = 0x4, fixed_abs, tag = 'smem constant byte address 0x4 - core index']
  #allocation1 [shape = 'u32[144,128]{1,0:T(1,128)}', space=vmem, size = 0x12000, scoped, tag = 'internal scratch']
  #allocation2 [shape = 'f32[4,8,384]{2,1,0:T(8,128)}', space=vmem, size = 0xc000, scoped, tag = 'scratch operand']
  #allocation3 [shape = 'f32[4,8,128]{2,1,0:T(8,128)}', space=vmem, size = 0x4000, scoped, tag = 'scratch operand']
  #allocation4 [shape = 'f32[8,128]{1,0:T(8,128)}', space=vmem, size = 0x1000, scoped, tag = 'scratch operand']
  %s0 = inlined_call_operand.vmem [shape: f32[8,8,4], index: 0, kind: input, shape index: {}]
  %s1 = inlined_call_operand.vmem [shape: f32[8,128], index: 1, kind: input, shape index: {}]
  %s2 = inlined_call_operand.vmem [shape: f32[4,384], index: 2, kind: input, shape index: {}]
  %s3 = inlined_call_operand.hbm [shape: f32[128,384], index: 3, kind: input, shape index: {}]
  %s4 = inlined_call_operand.vmem [shape: f32[1,384], index: 4, kind: input, shape index: {}]
  %s5 = inlined_call_operand.vmem [shape: f32[1,128], index: 5, kind: input, shape index: {}]
  %s6 = inlined_call_operand.hbm [shape: f32[128,128], index: 6, kind: input, shape index: {}]
  %s7 = inlined_call_operand.vmem [shape: f32[1,128], index: 7, kind: input, shape index: {}]
  %s8 = inlined_call_operand.hbm [shape: f32[8,8,128], index: 8, kind: output, shape index: {0}]
  %s9 = inlined_call_operand.hbm [shape: f32[8,128], index: 9, kind: output, shape index: {1}]
  %10 = xla_tuple %s8, %s9
  %s11 = sld [smem:[#allocation0]]
  $region85: #{tpu_custom_call.1} parent=0
    _
  %s13 = ssub.s32 1, %s11
  %s14 = scalar_select 0, %s13, %s11
  $region1: #{tpu_custom_call.1} parent=0
    #allocation5 [shape = 'u8[196608]{0}', space=vmem, size = 0x30000, scoped, tag = 'input window, operand 3, single buffered']
    #allocation6 [shape = 's32[2]{0}', space=sflag, size = 0x8, scoped, tag = 'scoped memory for tpu_custom_call.1']
    #allocation7 [shape = 's32[2]{0}', space=sflag, size = 0x8, scoped, tag = 'scoped memory for tpu_custom_call.1']
    #allocation8 [shape = 'u8[65536]{0}', space=vmem, size = 0x10000, scoped, tag = 'input window, operand 6, single buffered']
    #allocation9 [shape = 's32[1]{0}', space=sflag, size = 0x4, scoped, tag = 'scoped memory for tpu_custom_call.1']
    #allocation10 [shape = 'u8[32768]{0}', space=vmem, size = 0x8000, scoped, tag = 'output window, operand 0']
    #allocation11 [shape = 'u8[4096]{0}', space=vmem, size = 0x1000, scoped, tag = 'output window, operand 1, single buffered']
    #allocation12 [shape = 's32[1]{0}', space=sflag, size = 0x4, scoped, tag = 'scoped memory for tpu_custom_call.1']
    %15 = vsyncpa [#allocation6], 0
    %16 = vsyncpa [#allocation9], 0
    %17 = vsyncpa [#allocation7], 0
    %s18 = scalar_lea.sflag [#allocation7], 1
    %19 = vsyncpa %s18, 0
    %20 = vsyncpa [#allocation12], 0
    loop: start=0, step=1, limit=4
    $region2: #{tpu_custom_call.1} parent=1 // loop_pre_header
      _
    $region3: #{tpu_custom_call.1} parent=1 // loop_header
      %s22 = sphi 0, %s26
      %p23 = scmp.ge.s32.totalorder %s22, 4
      %s29 = sphi 0, %s41
      %s30 = sphi 0, %s37
      %s31 = sphi 0, %s29
      %s32 = sphi 0, %s30
      %s33 = sphi 0, %s31
      %s34 = sphi 0, %s32
      %s46 = sphi 0, %s48
      %s49 = sphi 0, %s46
      %s50 = sphi 0, %s49
      %s66 = sphi 0, %s50
      %s72 = sphi 0, %s74
      %s75 = sphi 0, %s72
      %s76 = sphi 0, %s75
      %s92 = sphi 0, %s76
      %s96 = sphi 0, %s96
      %s98 = sphi 0, %s96
      %s99 = sphi 0, %s98
      %s113 = sphi 0, %s99
      %s117 = sphi 0, %s117
      %s119 = sphi 0, %s117
      %s120 = sphi 0, %s119
      %s134 = sphi 0, %s120
      %s138 = sphi 0, %s138
      %s140 = sphi 0, %s138
      %s141 = sphi 0, %s140
      %s155 = sphi 0, %s141
      %s159 = sphi 0, %s159
      %s161 = sphi 0, %s159
      %s162 = sphi 0, %s161
      %s176 = sphi 0, %s162
      %s180 = sphi 0, %s180
      %s182 = sphi 0, %s180
      %s183 = sphi 0, %s182
      %s197 = sphi 0, %s183
      %s201 = sphi 0, %s201
      %s203 = sphi 0, %s201
      %s204 = sphi 0, %s203
      %s218 = sphi 0, %s204
      %s226 = sphi 0, %s228
      %s229 = sphi 0, %s226
      %s230 = sphi 0, %s229
      %s246 = sphi 0, %s230
      %s252 = sphi 0, %s254
      %s255 = sphi 0, %s252
      %s256 = sphi 0, %s255
      %s272 = sphi 0, %s256
    $region4: #{tpu_custom_call.1} parent=1 // loop_header_branch
      %25 = sbr.rel (%p23) target = $region8
    $region5: #{tpu_custom_call.1} parent=1 // loop_body
      %s27 = ssub.s32 %s22, 1
      %s28 = ssub.s32 %s22, 2
      %s35 = sadd.s32 1, %s30
      %p36 = scmp.ge.s32.totalorder %s35, 2
      %s37 = scalar_select %p36, 0, %s35
      %s38 = sadd.s32 1, %s29
      %s39 = scalar_select %p36, %s38, %s29
      %p40 = scmp.ge.s32.totalorder %s39, 1
      %s41 = scalar_select %p40, 0, %s39
      %s42 = ssub.s32 %s30, %s37
      %s43 = ssub.s32 %s29, %s41
      %s44 = sor.u32 %s42, %s43
      %p45 = scmp.eq.s32.totalorder %s44, 0
      %s47 = sadd.s32 %s46, 1
      %s48 = scalar_select %p45, %s46, %s47
      %p51 = pneg %p45
      %p52 = scmp.eq.s32.totalorder %s22, 1
      %p53 = por %p51, %p52
      %p54 = scmp.ne.s32.totalorder %s46, %s49
      %p55 = scmp.eq.s32.totalorder %s22, 0
      %p56 = por %p54, %p55
      %p57 = scmp.ne.s32.totalorder %s46, %s49
      %p58 = scmp.eq.s32.totalorder %s27, 1
      %p59 = por %p57, %p58
      %p60 = scmp.ne.s32.totalorder %s49, %s50
      %p61 = scmp.eq.s32.totalorder %s27, 0
      %p62 = por %p60, %p61
      %p63 = scmp.ne.s32.totalorder %s49, %s50
      %p64 = scmp.eq.s32.totalorder %s28, 1
      %p65 = por %p63, %p64
      %p67 = scmp.ne.s32.totalorder %s50, %s66
      %p68 = scmp.eq.s32.totalorder %s28, 0
      %p69 = por %p67, %p68
      %s70 = ssub.s32 %s29, %s41
      %p71 = scmp.eq.s32.totalorder %s70, 0
      %s73 = sadd.s32 %s72, 1
      %s74 = scalar_select %p71, %s72, %s73
      %p77 = pneg %p71
      %p78 = scmp.eq.s32.totalorder %s22, 1
      %p79 = por %p77, %p78
      %p80 = scmp.ne.s32.totalorder %s72, %s75
      %p81 = scmp.eq.s32.totalorder %s22, 0
      %p82 = por %p80, %p81
      %p83 = scmp.ne.s32.totalorder %s72, %s75
      %p84 = scmp.eq.s32.totalorder %s27, 1
      %p85 = por %p83, %p84
      %p86 = scmp.ne.s32.totalorder %s75, %s76
      %p87 = scmp.eq.s32.totalorder %s27, 0
      %p88 = por %p86, %p87
      %p89 = scmp.ne.s32.totalorder %s75, %s76
      %p90 = scmp.eq.s32.totalorder %s28, 1
      %p91 = por %p89, %p90
      %p93 = scmp.ne.s32.totalorder %s76, %s92
      %p94 = scmp.eq.s32.totalorder %s28, 0
      %p95 = por %p93, %p94
      %s97 = sadd.s32 %s96, 1
      %p100 = scmp.eq.s32.totalorder %s22, 1
      %p101 = scmp.ne.s32.totalorder %s96, %s98
      %p102 = scmp.eq.s32.totalorder %s22, 0
      %p103 = por %p101, %p102
      %p104 = scmp.ne.s32.totalorder %s96, %s98
      %p105 = scmp.eq.s32.totalorder %s27, 1
      %p106 = por %p104, %p105
      %p107 = scmp.ne.s32.totalorder %s98, %s99
      %p108 = scmp.eq.s32.totalorder %s27, 0
      %p109 = por %p107, %p108
      %p110 = scmp.ne.s32.totalorder %s98, %s99
      %p111 = scmp.eq.s32.totalorder %s28, 1
      %p112 = por %p110, %p111
      %p114 = scmp.ne.s32.totalorder %s99, %s113
      %p115 = scmp.eq.s32.totalorder %s28, 0
      %p116 = por %p114, %p115
      %s118 = sadd.s32 %s117, 1
      %p121 = scmp.eq.s32.totalorder %s22, 1
      %p122 = scmp.ne.s32.totalorder %s117, %s119
      %p123 = scmp.eq.s32.totalorder %s22, 0
      %p124 = por %p122, %p123
      %p125 = scmp.ne.s32.totalorder %s117, %s119
      %p126 = scmp.eq.s32.totalorder %s27, 1
      %p127 = por %p125, %p126
      %p128 = scmp.ne.s32.totalorder %s119, %s120
      %p129 = scmp.eq.s32.totalorder %s27, 0
      %p130 = por %p128, %p129
      %p131 = scmp.ne.s32.totalorder %s119, %s120
      %p132 = scmp.eq.s32.totalorder %s28, 1
      %p133 = por %p131, %p132
      %p135 = scmp.ne.s32.totalorder %s120, %s134
      %p136 = scmp.eq.s32.totalorder %s28, 0
      %p137 = por %p135, %p136
      %s139 = sadd.s32 %s138, 1
      %p142 = scmp.eq.s32.totalorder %s22, 1
      %p143 = scmp.ne.s32.totalorder %s138, %s140
      %p144 = scmp.eq.s32.totalorder %s22, 0
      %p145 = por %p143, %p144
      %p146 = scmp.ne.s32.totalorder %s138, %s140
      %p147 = scmp.eq.s32.totalorder %s27, 1
      %p148 = por %p146, %p147
      %p149 = scmp.ne.s32.totalorder %s140, %s141
      %p150 = scmp.eq.s32.totalorder %s27, 0
      %p151 = por %p149, %p150
      %p152 = scmp.ne.s32.totalorder %s140, %s141
      %p153 = scmp.eq.s32.totalorder %s28, 1
      %p154 = por %p152, %p153
      %p156 = scmp.ne.s32.totalorder %s141, %s155
      %p157 = scmp.eq.s32.totalorder %s28, 0
      %p158 = por %p156, %p157
      %s160 = sadd.s32 %s159, 1
      %p163 = scmp.eq.s32.totalorder %s22, 1
      %p164 = scmp.ne.s32.totalorder %s159, %s161
      %p165 = scmp.eq.s32.totalorder %s22, 0
      %p166 = por %p164, %p165
      %p167 = scmp.ne.s32.totalorder %s159, %s161
      %p168 = scmp.eq.s32.totalorder %s27, 1
      %p169 = por %p167, %p168
      %p170 = scmp.ne.s32.totalorder %s161, %s162
      %p171 = scmp.eq.s32.totalorder %s27, 0
      %p172 = por %p170, %p171
      %p173 = scmp.ne.s32.totalorder %s161, %s162
      %p174 = scmp.eq.s32.totalorder %s28, 1
      %p175 = por %p173, %p174
      %p177 = scmp.ne.s32.totalorder %s162, %s176
      %p178 = scmp.eq.s32.totalorder %s28, 0
      %p179 = por %p177, %p178
      %s181 = sadd.s32 %s180, 1
      %p184 = scmp.eq.s32.totalorder %s22, 1
      %p185 = scmp.ne.s32.totalorder %s180, %s182
      %p186 = scmp.eq.s32.totalorder %s22, 0
      %p187 = por %p185, %p186
      %p188 = scmp.ne.s32.totalorder %s180, %s182
      %p189 = scmp.eq.s32.totalorder %s27, 1
      %p190 = por %p188, %p189
      %p191 = scmp.ne.s32.totalorder %s182, %s183
      %p192 = scmp.eq.s32.totalorder %s27, 0
      %p193 = por %p191, %p192
      %p194 = scmp.ne.s32.totalorder %s182, %s183
      %p195 = scmp.eq.s32.totalorder %s28, 1
      %p196 = por %p194, %p195
      %p198 = scmp.ne.s32.totalorder %s183, %s197
      %p199 = scmp.eq.s32.totalorder %s28, 0
      %p200 = por %p198, %p199
      %s202 = sadd.s32 %s201, 1
      %p205 = scmp.eq.s32.totalorder %s22, 1
      %p206 = scmp.ne.s32.totalorder %s201, %s203
      %p207 = scmp.eq.s32.totalorder %s22, 0
      %p208 = por %p206, %p207
      %p209 = scmp.ne.s32.totalorder %s201, %s203
      %p210 = scmp.eq.s32.totalorder %s27, 1
      %p211 = por %p209, %p210
      %p212 = scmp.ne.s32.totalorder %s203, %s204
      %p213 = scmp.eq.s32.totalorder %s27, 0
      %p214 = por %p212, %p213
      %p215 = scmp.ne.s32.totalorder %s203, %s204
      %p216 = scmp.eq.s32.totalorder %s28, 1
      %p217 = por %p215, %p216
      %p219 = scmp.ne.s32.totalorder %s204, %s218
      %p220 = scmp.eq.s32.totalorder %s28, 0
      %p221 = por %p219, %p220
      %s222 = ssub.s32 %s30, %s37
      %s223 = ssub.s32 %s29, %s41
      %s224 = sor.u32 %s222, %s223
      %p225 = scmp.eq.s32.totalorder %s224, 0
      %s227 = sadd.s32 %s226, 1
      %s228 = scalar_select %p225, %s226, %s227
      %p231 = pneg %p225
      %p232 = scmp.eq.s32.totalorder %s22, 1
      %p233 = por %p231, %p232
      %p234 = scmp.ne.s32.totalorder %s226, %s229
      %p235 = scmp.eq.s32.totalorder %s22, 0
      %p236 = por %p234, %p235
      %p237 = scmp.ne.s32.totalorder %s226, %s229
      %p238 = scmp.eq.s32.totalorder %s27, 1
      %p239 = por %p237, %p238
      %p240 = scmp.ne.s32.totalorder %s229, %s230
      %p241 = scmp.eq.s32.totalorder %s27, 0
      %p242 = por %p240, %p241
      %p243 = scmp.ne.s32.totalorder %s229, %s230
      %p244 = scmp.eq.s32.totalorder %s28, 1
      %p245 = por %p243, %p244
      %p247 = scmp.ne.s32.totalorder %s230, %s246
      %p248 = scmp.eq.s32.totalorder %s28, 0
      %p249 = por %p247, %p248
      %s250 = ssub.s32 %s29, %s41
      %p251 = scmp.eq.s32.totalorder %s250, 0
      %s253 = sadd.s32 %s252, 1
      %s254 = scalar_select %p251, %s252, %s253
      %p257 = pneg %p251
      %p258 = scmp.eq.s32.totalorder %s22, 1
      %p259 = por %p257, %p258
      %p260 = scmp.ne.s32.totalorder %s252, %s255
      %p261 = scmp.eq.s32.totalorder %s22, 0
      %p262 = por %p260, %p261
      %p263 = scmp.ne.s32.totalorder %s252, %s255
      %p264 = scmp.eq.s32.totalorder %s27, 1
      %p265 = por %p263, %p264
      %p266 = scmp.ne.s32.totalorder %s255, %s256
      %p267 = scmp.eq.s32.totalorder %s27, 0
      %p268 = por %p266, %p267
      %p269 = scmp.ne.s32.totalorder %s255, %s256
      %p270 = scmp.eq.s32.totalorder %s28, 1
      %p271 = por %p269, %p270
      %p273 = scmp.ne.s32.totalorder %s256, %s272
      %p274 = scmp.eq.s32.totalorder %s28, 0
      %p275 = por %p273, %p274
      %p276 = scmp.le.s32.totalorder 1, %s22
      %p277 = scmp.lt.s32.totalorder %s22, 3
      %p278 = pnand %p276, %p277
      %p279 = pneg %p278
      // Predicated region
      $region9: #{tpu_custom_call.1} parent=5 // pred_check
        _
      $region10: #{tpu_custom_call.1} parent=5 // pred_check_branch
        %281 = sbr.rel (%p278) target = $region12
      $region11: #{tpu_custom_call.1} parent=5 // pred_region
        %s282 = ssub.s32 %s22, 1
        // Predicated region
        $region13: #{tpu_custom_call.1} parent=11 // pred_check
          %p283 = pneg %p88
        $region14: #{tpu_custom_call.1} parent=11 // pred_check_branch
          %285 = sbr.rel (%p283) target = $region16
        $region15: #{tpu_custom_call.1} parent=11 // pred_region
          %p286 = scmp.lt.s32.totalorder %s31, 0
          %s287 = scalar_select %p286, %s31, 0
          %s288 = smul.addr %s287, 8
          %s289 = scalar_lea.vmem %s1, %s288
        $region16: #{tpu_custom_call.1} parent=11 // pred_fallthru
          _
        // Predicated region
        $region17: #{tpu_custom_call.1} parent=11 // pred_check
          %p290 = pneg %p109
        $region18: #{tpu_custom_call.1} parent=11 // pred_check_branch
          %292 = sbr.rel (%p290) target = $region20
        $region19: #{tpu_custom_call.1} parent=11 // pred_region
          _
        $region20: #{tpu_custom_call.1} parent=11 // pred_fallthru
          _
        // Predicated region
        $region21: #{tpu_custom_call.1} parent=11 // pred_check
          %p293 = pneg %p130
        $region22: #{tpu_custom_call.1} parent=11 // pred_check_branch
          %295 = sbr.rel (%p293) target = $region24
        $region23: #{tpu_custom_call.1} parent=11 // pred_region
          %s297 = ssub.s32 6144, 6144
          %298 = vsyncadd [#allocation6], %s297
          %s299 = sshll.u32 [#allocation5], 4
          %s300 = int_to_ptr.vmem [resolvable:$true] %s299
          %305 = dma.hbm_to_vmem [thread:$0]  %s3, 6144, %s300, [#allocation6], 384, 384, 24
        $region24: #{tpu_custom_call.1} parent=11 // pred_fallthru
          _
        // Predicated region
        $region25: #{tpu_custom_call.1} parent=11 // pred_check
          %p306 = pneg %p151
        $region26: #{tpu_custom_call.1} parent=11 // pred_check_branch
          %308 = sbr.rel (%p306) target = $region28
        $region27: #{tpu_custom_call.1} parent=11 // pred_region
          _
        $region28: #{tpu_custom_call.1} parent=11 // pred_fallthru
          _
        // Predicated region
        $region29: #{tpu_custom_call.1} parent=11 // pred_check
          %p309 = pneg %p172
        $region30: #{tpu_custom_call.1} parent=11 // pred_check_branch
          %311 = sbr.rel (%p309) target = $region32
        $region31: #{tpu_custom_call.1} parent=11 // pred_region
          _
        $region32: #{tpu_custom_call.1} parent=11 // pred_fallthru
          _
        // Predicated region
        $region33: #{tpu_custom_call.1} parent=11 // pred_check
          %p312 = pneg %p193
        $region34: #{tpu_custom_call.1} parent=11 // pred_check_branch
          %314 = sbr.rel (%p312) target = $region36
        $region35: #{tpu_custom_call.1} parent=11 // pred_region
          %s316 = ssub.s32 2048, 2048
          %317 = vsyncadd [#allocation9], %s316
          %s318 = sshll.u32 [#allocation8], 4
          %s319 = int_to_ptr.vmem [resolvable:$true] %s318
          %324 = dma.hbm_to_vmem [thread:$0]  %s6, 2048, %s319, [#allocation9], 128, 128, 8
        $region36: #{tpu_custom_call.1} parent=11 // pred_fallthru
          _
        // Predicated region
        $region37: #{tpu_custom_call.1} parent=11 // pred_check
          %p325 = pneg %p214
        $region38: #{tpu_custom_call.1} parent=11 // pred_check_branch
          %327 = sbr.rel (%p325) target = $region40
        $region39: #{tpu_custom_call.1} parent=11 // pred_region
          _
        $region40: #{tpu_custom_call.1} parent=11 // pred_fallthru
          _
      $region12: #{tpu_custom_call.1} parent=5 // pred_fallthru
        _
      %p328 = scmp.lt.s32.totalorder %s22, 2
      // Predicated region
      $region41: #{tpu_custom_call.1} parent=5 // pred_check
        %p329 = pneg %p328
      $region42: #{tpu_custom_call.1} parent=5 // pred_check_branch
        %331 = sbr.rel (%p329) target = $region44
      $region43: #{tpu_custom_call.1} parent=5 // pred_region
        // Predicated region
        $region45: #{tpu_custom_call.1} parent=43 // pred_check
          %p332 = pneg %p56
        $region46: #{tpu_custom_call.1} parent=43 // pred_check_branch
          %334 = sbr.rel (%p332) target = $region48
        $region47: #{tpu_custom_call.1} parent=43 // pred_region
          %s335 = smul.u32 4, %s30
          %p336 = scmp.lt.s32.totalorder %s335, 7
          %s337 = scalar_select %p336, %s335, 7
          %p338 = scmp.lt.s32.totalorder %s29, 0
          %s339 = scalar_select %p338, %s29, 0
          %s340 = sadd.s32 %s339, %s337
          %s341 = smul.addr %s340, 8
          %s342 = scalar_lea.vmem %s0, %s341
          %s343 = smul.u32 4, %s30
        $region48: #{tpu_custom_call.1} parent=43 // pred_fallthru
          _
      $region44: #{tpu_custom_call.1} parent=5 // pred_fallthru
        _
      %p344 = scmp.le.s32.totalorder 1, %s22
      %p345 = scmp.lt.s32.totalorder %s22, 3
      %p346 = pnand %p344, %p345
      %p347 = pneg %p346
      // Predicated region
      $region49: #{tpu_custom_call.1} parent=5 // pred_check
        _
      $region50: #{tpu_custom_call.1} parent=5 // pred_check_branch
        %349 = sbr.rel (%p346) target = $region52
      $region51: #{tpu_custom_call.1} parent=5 // pred_region
        %s350 = ssub.s32 %s22, 1
        // Predicated region
        $region53: #{tpu_custom_call.1} parent=51 // pred_check
          %p351 = pneg %p130
        $region54: #{tpu_custom_call.1} parent=51 // pred_check_branch
          %353 = sbr.rel (%p351) target = $region56
        $region55: #{tpu_custom_call.1} parent=51 // pred_region
          %354 = dma.done [#allocation6], 6144
        $region56: #{tpu_custom_call.1} parent=51 // pred_fallthru
          _
        // Predicated region
        $region57: #{tpu_custom_call.1} parent=51 // pred_check
          %p355 = pneg %p193
        $region58: #{tpu_custom_call.1} parent=51 // pred_check_branch
          %357 = sbr.rel (%p355) target = $region60
        $region59: #{tpu_custom_call.1} parent=51 // pred_region
          %358 = dma.done [#allocation9], 2048
        $region60: #{tpu_custom_call.1} parent=51 // pred_fallthru
          _
        %s359 = smul.u32 4, %s32
        %p360 = scmp.lt.s32.totalorder %s359, 7
        %s361 = scalar_select %p360, %s359, 7
        %p362 = scmp.lt.s32.totalorder %s31, 0
        %s363 = scalar_select %p362, %s31, 0
        %s364 = sadd.s32 %s363, %s361
        %s365 = smul.addr %s364, 8
        %s366 = scalar_lea.vmem %s0, %s365
        %p367 = pneg %p62
        %p368 = pneg %p59
        %p369 = scmp.lt.s32.totalorder %s31, 0
        %s370 = scalar_select %p369, %s31, 0
        %s371 = smul.addr %s370, 8
        %s372 = scalar_lea.vmem %s1, %s371
        %p373 = pneg %p88
        %p374 = pneg %p85
        %p375 = pneg %p109
        %p376 = pneg %p106
        %p377 = pneg %p130
        %p378 = pneg %p127
        %p379 = pneg %p151
        %p380 = pneg %p148
        %p381 = pneg %p172
        %p382 = pneg %p169
        %p383 = pneg %p193
        %p384 = pneg %p190
        %p385 = pneg %p214
        %p386 = pneg %p211
        %p387 = pneg %p242
        %p388 = pneg %p239
        %s389 = sand.u32 %s229, 1
        %s390 = scalar_lea.sflag [#allocation7], %s389
        %s391 = sand.u32 %s229, 1
        %s392 = smul.addr %s391, 32
        %s393 = scalar_lea.vmem [#allocation10], %s392
        %p394 = pneg %p268
        %p395 = pneg %p265
        %s396 = smul.u32 4, %s32
        %p397 = scmp.lt.s32.totalorder %s396, 7
        %s398 = scalar_select %p397, %s396, 7
        %p399 = scmp.lt.s32.totalorder %s31, 0
        %s400 = scalar_select %p399, %s31, 0
        %s401 = sadd.s32 %s400, %s398
        %s402 = smul.addr %s401, 8
        %s403 = scalar_lea.vmem %s0, %s402
        %s404 = smul.u32 4, %s32
        %p405 = scmp.lt.s32.totalorder %s31, 0
        %s406 = scalar_select %p405, %s31, 0
        %s407 = smul.addr %s406, 8
        %s408 = scalar_lea.vmem %s1, %s407
        %s409 = smul.u32 4, %s32
        %p410 = scmp.eq.s32.totalorder %s32, 0
        // Predicated region
        $region61: #{tpu_custom_call.1} parent=51 // pred_check
          %p411 = pneg %p410
        $region62: #{tpu_custom_call.1} parent=51 // pred_check_branch
          %413 = sbr.rel (%p411) target = $region64
        $region63: #{tpu_custom_call.1} parent=51 // pred_region
          %v414 = vld [vmem:[%s408] sm:$0xff]
          %415 = vst [vmem:[#allocation4] sm:$0xff] %v414
        $region64: #{tpu_custom_call.1} parent=51 // pred_fallthru
          _
        %v416 = vld [vmem:[%s403] sm:$0xff]
        %v417 = vld [vmem:[%s403 + $0x8] sm:$0xff]
        %v418 = vld [vmem:[%s403 + $0x10] sm:$0xff]
        %v419 = vld [vmem:[%s403 + $0x18] sm:$0xff]
        %v420 = vld [vmem:[%s2] sm:$0xff]
        %v421 = vld [vmem:[%s2 + $0x8] sm:$0xf]
        %v422 = vld [vmem:[%s4] sm:$0x7]
        %v424 = vlaneseq
        %v425 = vshrl.u32 %v424, 7
        %v426 = vsub.s32 0, %v425
        %v427 = vrot.slane %v422, %v426
        %v428 = vlaneseq
        %v429 = vshrl.u32 %v428, 7
        %v430 = vsub.s32 1, %v429
        %v431 = vrot.slane %v422, %v430
        %v432 = vlaneseq
        %v433 = vshrl.u32 %v432, 7
        %v434 = vsub.s32 2, %v433
        %v435 = vrot.slane %v422, %v434
        %v441 = vcombine.high %v420, %v420
        %vm442 = vcmask 31744
        %v444 = vsel %vm442, %v416, 0
        %v447 = vsel %vm442, %v417, 0
        %v450 = vsel %vm442, %v418, 0
        %v453 = vsel %vm442, %v419, 0
        %vm455 = vcmask 1043456
        %v456 = vsel %vm455, %v420, 0
        %v458 = vsel %vm455, %v441, 0
        %v460 = vsel %vm455, %v421, 0
        %462 = vmatprep.subr.mxu0 %v458
        %463 = vmatpush1.msra.mxu0 %v456
        %464 = vmatprep.subr.mxu0 0.0
        %465 = vmatpush1.msra.mxu0 0.0
        %466 = vmatprep.subr.mxu0 0.0
        %467 = vmatpush1.msra.mxu0 0.0
        %468 = vmatprep.subr.mxu0 0.0
        %469 = vmatpush1.msra.mxu0 0.0
        %470 = vmatprep.subr.mxu0 0.0
        %471 = vmatpush1.msra.mxu0 0.0
        %472 = vmatprep.subr.mxu0 0.0
        %473 = vmatpush1.msra.mxu0 0.0
        %474 = vmatprep.subr.mxu0 0.0
        %475 = vmatpush1.msra.mxu0 0.0
        %476 = vmatprep.subr.mxu0 0.0
        %477 = vmatpush1.msra.mxu0 0.0
        %478 = vmatprep.subr.mxu0 0.0
        %479 = vmatpush1.msra.mxu0 0.0
        %480 = vmatprep.subr.mxu0 0.0
        %481 = vmatpush1.msra.mxu0 0.0
        %482 = vmatprep.subr.mxu0 0.0
        %483 = vmatpush1.msra.mxu0 0.0
        %484 = vmatprep.subr.mxu0 0.0
        %485 = vmatpush1.msra.mxu0 0.0
        %486 = vmatprep.subr.mxu0 0.0
        %487 = vmatpush1.msra.mxu0 0.0
        %488 = vmatprep.subr.mxu0 0.0
        %489 = vmatpush1.msra.mxu0 0.0
        %490 = vmatprep.subr.mxu0 0.0
        %491 = vmatpush1.msra.mxu0 0.0
        %492 = vmatprep.subr.mxu0 0.0
        %493 = vmatpush1.msra.mxu0 0.0
        %494 = vmatprep.subr.mxu0 0.0
        %495 = vmatpush1.msra.mxu0 0.0
        %496 = vmatprep.subr.mxu0 0.0
        %497 = vmatpush1.msra.mxu0 0.0
        %498 = vmatprep.subr.mxu0 0.0
        %499 = vmatpush1.msra.mxu0 0.0
        %500 = vmatprep.subr.mxu0 0.0
        %501 = vmatpush1.msra.mxu0 0.0
        %502 = vmatprep.subr.mxu0 0.0
        %503 = vmatpush1.msra.mxu0 0.0
        %504 = vmatprep.subr.mxu0 0.0
        %505 = vmatpush1.msra.mxu0 0.0
        %506 = vmatprep.subr.mxu0 0.0
        %507 = vmatpush1.msra.mxu0 0.0
        %508 = vmatprep.subr.mxu0 0.0
        %509 = vmatpush1.msra.mxu0 0.0
        %510 = vmatprep.subr.mxu0 0.0
        %511 = vmatpush1.msra.mxu0 0.0
        %512 = vmatprep.subr.mxu0 0.0
        %513 = vmatpush1.msra.mxu0 0.0
        %514 = vmatprep.subr.mxu0 0.0
        %515 = vmatpush1.msra.mxu0 0.0
        %516 = vmatprep.subr.mxu0 0.0
        %517 = vmatpush1.msra.mxu0 0.0
        %518 = vmatprep.subr.mxu0 0.0
        %519 = vmatpush1.msra.mxu0 0.0
        %520 = vmatprep.subr.mxu0 0.0
        %521 = vmatpush1.msra.mxu0 0.0
        %522 = vmatprep.subr.mxu0 0.0
        %523 = vmatpush1.msra.mxu0 0.0
        %524 = vmatprep.subr.mxu0 0.0
        %525 = vmatpush1.msra.mxu0 0.0
        %526 = vmatprep.mubr.f32.mxu0 0.0
        %527 = vmatmul.mubr.f32.gmra.mrb[0].mxu0 %v444
        %v528 = vpop.f32.mrb[0].mxu0
        %v529 = vadd.f32 %v427, %v528
        %v530 = vpop.f32.mrb[0].mxu0
        %v531 = vadd.f32 %v431, %v530
        %532 = vmatprep.mubr.f32.mxu0 0.0
        %533 = vmatmul.mubr.f32.gmra.mrb[0].mxu0 %v447
        %v534 = vpop.f32.mrb[0].mxu0
        %v535 = vadd.f32 %v427, %v534
        %v536 = vpop.f32.mrb[0].mxu0
        %v537 = vadd.f32 %v431, %v536
        %538 = vmatprep.mubr.f32.mxu0 0.0
        %539 = vmatmul.mubr.f32.gmra.mrb[0].mxu0 %v450
        %v540 = vpop.f32.mrb[0].mxu0
        %v541 = vadd.f32 %v427, %v540
        %v542 = vpop.f32.mrb[0].mxu0
        %v543 = vadd.f32 %v431, %v542
        %544 = vmatprep.mubr.f32.mxu0 0.0
        %545 = vmatmul.mubr.f32.gmra.mrb[0].mxu0 %v453
        %v546 = vpop.f32.mrb[0].mxu0
        %v547 = vadd.f32 %v427, %v546
        %v548 = vpop.f32.mrb[0].mxu0
        %v549 = vadd.f32 %v431, %v548
        %550 = vdwg.mxu0
        %551 = vmatprep.subr.mxu0 0.0
        %552 = vmatpush1.msra.mxu0 %v460
        %553 = vmatprep.subr.mxu0 0.0
        %554 = vmatpush1.msra.mxu0 0.0
        %555 = vmatprep.subr.mxu0 0.0
        %556 = vmatpush1.msra.mxu0 0.0
        %557 = vmatprep.subr.mxu0 0.0
        %558 = vmatpush1.msra.mxu0 0.0
        %559 = vmatprep.subr.mxu0 0.0
        %560 = vmatpush1.msra.mxu0 0.0
        %561 = vmatprep.subr.mxu0 0.0
        %562 = vmatpush1.msra.mxu0 0.0
        %563 = vmatprep.subr.mxu0 0.0
        %564 = vmatpush1.msra.mxu0 0.0
        %565 = vmatprep.subr.mxu0 0.0
        %566 = vmatpush1.msra.mxu0 0.0
        %567 = vmatprep.subr.mxu0 0.0
        %568 = vmatpush1.msra.mxu0 0.0
        %569 = vmatprep.subr.mxu0 0.0
        %570 = vmatpush1.msra.mxu0 0.0
        %571 = vmatprep.subr.mxu0 0.0
        %572 = vmatpush1.msra.mxu0 0.0
        %573 = vmatprep.subr.mxu0 0.0
        %574 = vmatpush1.msra.mxu0 0.0
        %575 = vmatprep.subr.mxu0 0.0
        %576 = vmatpush1.msra.mxu0 0.0
        %577 = vmatprep.subr.mxu0 0.0
        %578 = vmatpush1.msra.mxu0 0.0
        %579 = vmatprep.subr.mxu0 0.0
        %580 = vmatpush1.msra.mxu0 0.0
        %581 = vmatprep.subr.mxu0 0.0
        %582 = vmatpush1.msra.mxu0 0.0
        %583 = vmatprep.subr.mxu0 0.0
        %584 = vmatpush1.msra.mxu0 0.0
        %585 = vmatprep.subr.mxu0 0.0
        %586 = vmatpush1.msra.mxu0 0.0
        %587 = vmatprep.subr.mxu0 0.0
        %588 = vmatpush1.msra.mxu0 0.0
        %589 = vmatprep.subr.mxu0 0.0
        %590 = vmatpush1.msra.mxu0 0.0
        %591 = vmatprep.subr.mxu0 0.0
        %592 = vmatpush1.msra.mxu0 0.0
        %593 = vmatprep.subr.mxu0 0.0
        %594 = vmatpush1.msra.mxu0 0.0
        %595 = vmatprep.subr.mxu0 0.0
        %596 = vmatpush1.msra.mxu0 0.0
        %597 = vmatprep.subr.mxu0 0.0
        %598 = vmatpush1.msra.mxu0 0.0
        %599 = vmatprep.subr.mxu0 0.0
        %600 = vmatpush1.msra.mxu0 0.0
        %601 = vmatprep.subr.mxu0 0.0
        %602 = vmatpush1.msra.mxu0 0.0
        %603 = vmatprep.subr.mxu0 0.0
        %604 = vmatpush1.msra.mxu0 0.0
        %605 = vmatprep.subr.mxu0 0.0
        %606 = vmatpush1.msra.mxu0 0.0
        %607 = vmatprep.subr.mxu0 0.0
        %608 = vmatpush1.msra.mxu0 0.0
        %609 = vmatprep.subr.mxu0 0.0
        %610 = vmatpush1.msra.mxu0 0.0
        %611 = vmatprep.subr.mxu0 0.0
        %612 = vmatpush1.msra.mxu0 0.0
        %613 = vmatprep.subr.mxu0 0.0
        %614 = vmatpush1.msra.mxu0 0.0
        %615 = vmatprep.mubr.f32.mxu0 0.0
        %616 = vmatmul.mubr.f32.gmra.mrb[0].mxu0 %v444
        %v617 = vpop.f32.mrb[0].mxu0
        %v618 = vadd.f32 %v435, %v617
        %v619 = vpop.f32.mrb[0].mxu0
        %620 = vmatprep.mubr.f32.mxu0 0.0
        %621 = vmatmul.mubr.f32.gmra.mrb[0].mxu0 %v447
        %v622 = vpop.f32.mrb[0].mxu0
        %v623 = vadd.f32 %v435, %v622
        %v624 = vpop.f32.mrb[0].mxu0
        %625 = vmatprep.mubr.f32.mxu0 0.0
        %626 = vmatmul.mubr.f32.gmra.mrb[0].mxu0 %v450
        %v627 = vpop.f32.mrb[0].mxu0
        %v628 = vadd.f32 %v435, %v627
        %v629 = vpop.f32.mrb[0].mxu0
        %630 = vmatprep.mubr.f32.mxu0 0.0
        %631 = vmatmul.mubr.f32.gmra.mrb[0].mxu0 %v453
        %v632 = vpop.f32.mrb[0].mxu0
        %v633 = vadd.f32 %v435, %v632
        %v634 = vpop.f32.mrb[0].mxu0
        %635 = vdwg.mxu0
        %636 = vst [vmem:[#allocation2] sm:$0xff] %v529
        %637 = vst [vmem:[#allocation2 + $0x8] sm:$0xff] %v531
        %638 = vst [vmem:[#allocation2 + $0x10] sm:$0xff] %v618
        %639 = vst [vmem:[#allocation2 + $0x18] sm:$0xff] %v535
        %640 = vst [vmem:[#allocation2 + $0x20] sm:$0xff] %v537
        %641 = vst [vmem:[#allocation2 + $0x28] sm:$0xff] %v623
        %642 = vst [vmem:[#allocation2 + $0x30] sm:$0xff] %v541
        %643 = vst [vmem:[#allocation2 + $0x38] sm:$0xff] %v543
        %644 = vst [vmem:[#allocation2 + $0x40] sm:$0xff] %v628
        %645 = vst [vmem:[#allocation2 + $0x48] sm:$0xff] %v547
        %646 = vst [vmem:[#allocation2 + $0x50] sm:$0xff] %v549
        %647 = vst [vmem:[#allocation2 + $0x58] sm:$0xff] %v633
        %v648 = vld [vmem:[#allocation5] sm:$0xff]
        %v649 = vld [vmem:[#allocation5 + $0x8] sm:$0xff]
        %v650 = vld [vmem:[#allocation5 + $0x10] sm:$0xff]
        %v651 = vld [vmem:[#allocation5 + $0x18] sm:$0xff]
        %v652 = vld [vmem:[#allocation5 + $0x20] sm:$0xff]
        %v653 = vld [vmem:[#allocation5 + $0x28] sm:$0xff]
        %v654 = vld [vmem:[#allocation5 + $0x30] sm:$0xff]
        %v655 = vld [vmem:[#allocation5 + $0x38] sm:$0xff]
        %v656 = vld [vmem:[#allocation5 + $0x40] sm:$0xff]
        %v657 = vld [vmem:[#allocation5 + $0x48] sm:$0xff]
        %v658 = vld [vmem:[#allocation5 + $0x50] sm:$0xff]
        %v659 = vld [vmem:[#allocation5 + $0x58] sm:$0xff]
        %v660 = vld [vmem:[#allocation5 + $0x60] sm:$0xff]
        %v661 = vld [vmem:[#allocation5 + $0x68] sm:$0xff]
        %v662 = vld [vmem:[#allocation5 + $0x70] sm:$0xff]
        %v663 = vld [vmem:[#allocation5 + $0x78] sm:$0xff]
        %v664 = vld [vmem:[#allocation5 + $0x80] sm:$0xff]
        %v665 = vld [vmem:[#allocation5 + $0x88] sm:$0xff]
        %v666 = vld [vmem:[#allocation5 + $0x90] sm:$0xff]
        %v667 = vld [vmem:[#allocation5 + $0x98] sm:$0xff]
        %v668 = vld [vmem:[#allocation5 + $0xa0] sm:$0xff]
        %v669 = vld [vmem:[#allocation5 + $0xa8] sm:$0xff]
        %v670 = vld [vmem:[#allocation5 + $0xb0] sm:$0xff]
        %v671 = vld [vmem:[#allocation5 + $0xb8] sm:$0xff]
        %v672 = vld [vmem:[#allocation5 + $0xc0] sm:$0xff]
        %v673 = vld [vmem:[#allocation5 + $0xc8] sm:$0xff]
        %v674 = vld [vmem:[#allocation5 + $0xd0] sm:$0xff]
        %v675 = vld [vmem:[#allocation5 + $0xd8] sm:$0xff]
        %v676 = vld [vmem:[#allocation5 + $0xe0] sm:$0xff]
        %v677 = vld [vmem:[#allocation5 + $0xe8] sm:$0xff]
        %v678 = vld [vmem:[#allocation5 + $0xf0] sm:$0xff]
        %v679 = vld [vmem:[#allocation5 + $0xf8] sm:$0xff]
        %v680 = vld [vmem:[#allocation5 + $0x100] sm:$0xff]
        %v681 = vld [vmem:[#allocation5 + $0x108] sm:$0xff]
        %v682 = vld [vmem:[#allocation5 + $0x110] sm:$0xff]
        %v683 = vld [vmem:[#allocation5 + $0x118] sm:$0xff]
        %v684 = vld [vmem:[#allocation5 + $0x120] sm:$0xff]
        %v685 = vld [vmem:[#allocation5 + $0x128] sm:$0xff]
        %v686 = vld [vmem:[#allocation5 + $0x130] sm:$0xff]
        %v687 = vld [vmem:[#allocation5 + $0x138] sm:$0xff]
        %v688 = vld [vmem:[#allocation5 + $0x140] sm:$0xff]
        %v689 = vld [vmem:[#allocation5 + $0x148] sm:$0xff]
        %v690 = vld [vmem:[#allocation5 + $0x150] sm:$0xff]
        %v691 = vld [vmem:[#allocation5 + $0x158] sm:$0xff]
        %v692 = vld [vmem:[#allocation5 + $0x160] sm:$0xff]
        %v693 = vld [vmem:[#allocation5 + $0x168] sm:$0xff]
        %v694 = vld [vmem:[#allocation5 + $0x170] sm:$0xff]
        %v695 = vld [vmem:[#allocation5 + $0x178] sm:$0xff]
        %v696 = vld [vmem:[%s5] sm:$0x1]
        %v698 = vlaneseq
        %v699 = vshrl.u32 %v698, 7
        %v700 = vsub.s32 0, %v699
        %v701 = vrot.slane %v696, %v700
        %v703 = vld [vmem:[#allocation4] sm:$0xff]
        %v704 = vld [vmem:[#allocation2] sm:$0xff]
        %v705 = vld [vmem:[#allocation2 + $0x8] sm:$0xff]
        %v706 = vld [vmem:[#allocation2 + $0x10] sm:$0xff]
        %707 = vmatprep.subr.mxu0 %v649
        %708 = vmatpush1.msra.mxu0 %v648
        %709 = vmatprep.subr.mxu0 %v652
        %710 = vmatpush1.msra.mxu0 %v651
        %711 = vmatprep.subr.mxu0 %v655
        %712 = vmatpush1.msra.mxu0 %v654
        %713 = vmatprep.subr.mxu0 %v658
        %714 = vmatpush1.msra.mxu0 %v657
        %715 = vmatprep.subr.mxu0 %v661
        %716 = vmatpush1.msra.mxu0 %v660
        %717 = vmatprep.subr.mxu0 %v664
        %718 = vmatpush1.msra.mxu0 %v663
        %719 = vmatprep.subr.mxu0 %v667
        %720 = vmatpush1.msra.mxu0 %v666
        %721 = vmatprep.subr.mxu0 %v670
        %722 = vmatpush1.msra.mxu0 %v669
        %723 = vmatprep.subr.mxu0 %v673
        %724 = vmatpush1.msra.mxu0 %v672
        %725 = vmatprep.subr.mxu0 %v676
        %726 = vmatpush1.msra.mxu0 %v675
        %727 = vmatprep.subr.mxu0 %v679
        %728 = vmatpush1.msra.mxu0 %v678
        %729 = vmatprep.subr.mxu0 %v682
        %730 = vmatpush1.msra.mxu0 %v681
        %731 = vmatprep.subr.mxu0 %v685
        %732 = vmatpush1.msra.mxu0 %v684
        %733 = vmatprep.subr.mxu0 %v688
        %734 = vmatpush1.msra.mxu0 %v687
        %735 = vmatprep.subr.mxu0 %v691
        %736 = vmatpush1.msra.mxu0 %v690
        %737 = vmatprep.subr.mxu0 %v694
        %738 = vmatpush1.msra.mxu0 %v693
        %739 = vmatprep.subr.mxu0 0.0
        %740 = vmatpush1.msra.mxu0 0.0
        %741 = vmatprep.subr.mxu0 0.0
        %742 = vmatpush1.msra.mxu0 0.0
        %743 = vmatprep.subr.mxu0 0.0
        %744 = vmatpush1.msra.mxu0 0.0
        %745 = vmatprep.subr.mxu0 0.0
        %746 = vmatpush1.msra.mxu0 0.0
        %747 = vmatprep.subr.mxu0 0.0
        %748 = vmatpush1.msra.mxu0 0.0
        %749 = vmatprep.subr.mxu0 0.0
        %750 = vmatpush1.msra.mxu0 0.0
        %751 = vmatprep.subr.mxu0 0.0
        %752 = vmatpush1.msra.mxu0 0.0
        %753 = vmatprep.subr.mxu0 0.0
        %754 = vmatpush1.msra.mxu0 0.0
        %755 = vmatprep.subr.mxu0 0.0
        %756 = vmatpush1.msra.mxu0 0.0
        %757 = vmatprep.subr.mxu0 0.0
        %758 = vmatpush1.msra.mxu0 0.0
        %759 = vmatprep.subr.mxu0 0.0
        %760 = vmatpush1.msra.mxu0 0.0
        %761 = vmatprep.subr.mxu0 0.0
        %762 = vmatpush1.msra.mxu0 0.0
        %763 = vmatprep.subr.mxu0 0.0
        %764 = vmatpush1.msra.mxu0 0.0
        %765 = vmatprep.subr.mxu0 0.0
        %766 = vmatpush1.msra.mxu0 0.0
        %767 = vmatprep.subr.mxu0 0.0
        %768 = vmatpush1.msra.mxu0 0.0
        %769 = vmatprep.subr.mxu0 0.0
        %770 = vmatpush1.msra.mxu0 0.0
        %771 = vmatprep.mubr.f32.mxu0 0.0
        %772 = vmatmul.mubr.f32.gmra.mrb[0].mxu0 %v703
        %v773 = vpop.f32.mrb[0].mxu0
        %v774 = vadd.f32 0.0, %v773
        %v775 = vpop.f32.mrb[0].mxu0
        %v776 = vadd.f32 0.0, %v775
        %777 = vdwg.mxu0
        %778 = vmatprep.subr.mxu0 0.0
        %779 = vmatpush1.msra.mxu0 %v650
        %780 = vmatprep.subr.mxu0 0.0
        %781 = vmatpush1.msra.mxu0 %v653
        %782 = vmatprep.subr.mxu0 0.0
        %783 = vmatpush1.msra.mxu0 %v656
        %784 = vmatprep.subr.mxu0 0.0
        %785 = vmatpush1.msra.mxu0 %v659
        %786 = vmatprep.subr.mxu0 0.0
        %787 = vmatpush1.msra.mxu0 %v662
        %788 = vmatprep.subr.mxu0 0.0
        %789 = vmatpush1.msra.mxu0 %v665
        %790 = vmatprep.subr.mxu0 0.0
        %791 = vmatpush1.msra.mxu0 %v668
        %792 = vmatprep.subr.mxu0 0.0
        %793 = vmatpush1.msra.mxu0 %v671
        %794 = vmatprep.subr.mxu0 0.0
        %795 = vmatpush1.msra.mxu0 %v674
        %796 = vmatprep.subr.mxu0 0.0
        %797 = vmatpush1.msra.mxu0 %v677
        %798 = vmatprep.subr.mxu0 0.0
        %799 = vmatpush1.msra.mxu0 %v680
        %800 = vmatprep.subr.mxu0 0.0
        %801 = vmatpush1.msra.mxu0 %v683
        %802 = vmatprep.subr.mxu0 0.0
        %803 = vmatpush1.msra.mxu0 %v686
        %804 = vmatprep.subr.mxu0 0.0
        %805 = vmatpush1.msra.mxu0 %v689
        %806 = vmatprep.subr.mxu0 0.0
        %807 = vmatpush1.msra.mxu0 %v692
        %808 = vmatprep.subr.mxu0 0.0
        %809 = vmatpush1.msra.mxu0 %v695
        %810 = vmatprep.subr.mxu0 0.0
        %811 = vmatpush1.msra.mxu0 0.0
        %812 = vmatprep.subr.mxu0 0.0
        %813 = vmatpush1.msra.mxu0 0.0
        %814 = vmatprep.subr.mxu0 0.0
        %815 = vmatpush1.msra.mxu0 0.0
        %816 = vmatprep.subr.mxu0 0.0
        %817 = vmatpush1.msra.mxu0 0.0
        %818 = vmatprep.subr.mxu0 0.0
        %819 = vmatpush1.msra.mxu0 0.0
        %820 = vmatprep.subr.mxu0 0.0
        %821 = vmatpush1.msra.mxu0 0.0
        %822 = vmatprep.subr.mxu0 0.0
        %823 = vmatpush1.msra.mxu0 0.0
        %824 = vmatprep.subr.mxu0 0.0
        %825 = vmatpush1.msra.mxu0 0.0
        %826 = vmatprep.subr.mxu0 0.0
        %827 = vmatpush1.msra.mxu0 0.0
        %828 = vmatprep.subr.mxu0 0.0
        %829 = vmatpush1.msra.mxu0 0.0
        %830 = vmatprep.subr.mxu0 0.0
        %831 = vmatpush1.msra.mxu0 0.0
        %832 = vmatprep.subr.mxu0 0.0
        %833 = vmatpush1.msra.mxu0 0.0
        %834 = vmatprep.subr.mxu0 0.0
        %835 = vmatpush1.msra.mxu0 0.0
        %836 = vmatprep.subr.mxu0 0.0
        %837 = vmatpush1.msra.mxu0 0.0
        %838 = vmatprep.subr.mxu0 0.0
        %839 = vmatpush1.msra.mxu0 0.0
        %840 = vmatprep.subr.mxu0 0.0
        %841 = vmatpush1.msra.mxu0 0.0
        %842 = vmatprep.mubr.f32.mxu0 0.0
        %843 = vmatmul.mubr.f32.gmra.mrb[0].mxu0 %v703
        %v844 = vpop.f32.mrb[0].mxu0
        %v845 = vadd.f32 0.0, %v844
        %v846 = vpop.f32.mrb[0].mxu0
        %847 = vdwg.mxu0
        %v848 = vadd.f32 %v704, %v774
        %v849 = vxor.u32 %v848, 2147483648
        %v850 = vmul.f32 %v849, 1.442695
        %v851 = vpow.pop %v850
        %v852 = vadd.f32 %v851, 1.0
        %v853 = vrcp.pop %v852
        %v854 = vmul.f32 1.0, %v853
        %v855 = vadd.f32 %v705, %v776
        %v856 = vxor.u32 %v855, 2147483648
        %v857 = vmul.f32 %v856, 1.442695
        %v858 = vpow.pop %v857
        %v859 = vadd.f32 %v858, 1.0
        %v860 = vrcp.pop %v859
        %v861 = vmul.f32 1.0, %v860
        %v862 = vadd.f32 %v845, %v701
        %v863 = vmul.f32 %v854, %v862
        %v864 = vadd.f32 %v706, %v863
        %v865 = vtanh.pop %v864
        %v866 = vsub.f32 1.0, %v861
        %v867 = vmul.f32 %v866, %v865
        %v868 = vmul.f32 %v861, %v703
        %v869 = vadd.f32 %v867, %v868
        %870 = vst [vmem:[#allocation3] sm:$0xff] %v869
        %s871 = scalar_lea.vmem [#allocation2], 24
        %v872 = vld [vmem:[%s871] sm:$0xff]
        %v873 = vld [vmem:[%s871 + $0x8] sm:$0xff]
        %v874 = vld [vmem:[%s871 + $0x10] sm:$0xff]
        %875 = vmatprep.subr.mxu0 %v649
        %876 = vmatpush1.msra.mxu0 %v648
        %877 = vmatprep.subr.mxu0 %v652
        %878 = vmatpush1.msra.mxu0 %v651
        %879 = vmatprep.subr.mxu0 %v655
        %880 = vmatpush1.msra.mxu0 %v654
        %881 = vmatprep.subr.mxu0 %v658
        %882 = vmatpush1.msra.mxu0 %v657
        %883 = vmatprep.subr.mxu0 %v661
        %884 = vmatpush1.msra.mxu0 %v660
        %885 = vmatprep.subr.mxu0 %v664
        %886 = vmatpush1.msra.mxu0 %v663
        %887 = vmatprep.subr.mxu0 %v667
        %888 = vmatpush1.msra.mxu0 %v666
        %889 = vmatprep.subr.mxu0 %v670
        %890 = vmatpush1.msra.mxu0 %v669
        %891 = vmatprep.subr.mxu0 %v673
        %892 = vmatpush1.msra.mxu0 %v672
        %893 = vmatprep.subr.mxu0 %v676
        %894 = vmatpush1.msra.mxu0 %v675
        %895 = vmatprep.subr.mxu0 %v679
        %896 = vmatpush1.msra.mxu0 %v678
        %897 = vmatprep.subr.mxu0 %v682
        %898 = vmatpush1.msra.mxu0 %v681
        %899 = vmatprep.subr.mxu0 %v685
        %900 = vmatpush1.msra.mxu0 %v684
        %901 = vmatprep.subr.mxu0 %v688
        %902 = vmatpush1.msra.mxu0 %v687
        %903 = vmatprep.subr.mxu0 %v691
        %904 = vmatpush1.msra.mxu0 %v690
        %905 = vmatprep.subr.mxu0 %v694
        %906 = vmatpush1.msra.mxu0 %v693
        %907 = vmatprep.subr.mxu0 0.0
        %908 = vmatpush1.msra.mxu0 0.0
        %909 = vmatprep.subr.mxu0 0.0
        %910 = vmatpush1.msra.mxu0 0.0
        %911 = vmatprep.subr.mxu0 0.0
        %912 = vmatpush1.msra.mxu0 0.0
        %913 = vmatprep.subr.mxu0 0.0
        %914 = vmatpush1.msra.mxu0 0.0
        %915 = vmatprep.subr.mxu0 0.0
        %916 = vmatpush1.msra.mxu0 0.0
        %917 = vmatprep.subr.mxu0 0.0
        %918 = vmatpush1.msra.mxu0 0.0
        %919 = vmatprep.subr.mxu0 0.0
        %920 = vmatpush1.msra.mxu0 0.0
        %921 = vmatprep.subr.mxu0 0.0
        %922 = vmatpush1.msra.mxu0 0.0
        %923 = vmatprep.subr.mxu0 0.0
        %924 = vmatpush1.msra.mxu0 0.0
        %925 = vmatprep.subr.mxu0 0.0
        %926 = vmatpush1.msra.mxu0 0.0
        %927 = vmatprep.subr.mxu0 0.0
        %928 = vmatpush1.msra.mxu0 0.0
        %929 = vmatprep.subr.mxu0 0.0
        %930 = vmatpush1.msra.mxu0 0.0
        %931 = vmatprep.subr.mxu0 0.0
        %932 = vmatpush1.msra.mxu0 0.0
        %933 = vmatprep.subr.mxu0 0.0
        %934 = vmatpush1.msra.mxu0 0.0
        %935 = vmatprep.subr.mxu0 0.0
        %936 = vmatpush1.msra.mxu0 0.0
        %937 = vmatprep.subr.mxu0 0.0
        %938 = vmatpush1.msra.mxu0 0.0
        %939 = vmatprep.mubr.f32.mxu0 0.0
        %940 = vmatmul.mubr.f32.gmra.mrb[0].mxu0 %v869
        %v941 = vpop.f32.mrb[0].mxu0
        %v942 = vadd.f32 0.0, %v941
        %v943 = vpop.f32.mrb[0].mxu0
        %v944 = vadd.f32 0.0, %v943
        %945 = vdwg.mxu0
        %946 = vmatprep.subr.mxu0 0.0
        %947 = vmatpush1.msra.mxu0 %v650
        %948 = vmatprep.subr.mxu0 0.0
        %949 = vmatpush1.msra.mxu0 %v653
        %950 = vmatprep.subr.mxu0 0.0
        %951 = vmatpush1.msra.mxu0 %v656
        %952 = vmatprep.subr.mxu0 0.0
        %953 = vmatpush1.msra.mxu0 %v659
        %954 = vmatprep.subr.mxu0 0.0
        %955 = vmatpush1.msra.mxu0 %v662
        %956 = vmatprep.subr.mxu0 0.0
        %957 = vmatpush1.msra.mxu0 %v665
        %958 = vmatprep.subr.mxu0 0.0
        %959 = vmatpush1.msra.mxu0 %v668
        %960 = vmatprep.subr.mxu0 0.0
        %961 = vmatpush1.msra.mxu0 %v671
        %962 = vmatprep.subr.mxu0 0.0
        %963 = vmatpush1.msra.mxu0 %v674
        %964 = vmatprep.subr.mxu0 0.0
        %965 = vmatpush1.msra.mxu0 %v677
        %966 = vmatprep.subr.mxu0 0.0
        %967 = vmatpush1.msra.mxu0 %v680
        %968 = vmatprep.subr.mxu0 0.0
        %969 = vmatpush1.msra.mxu0 %v683
        %970 = vmatprep.subr.mxu0 0.0
        %971 = vmatpush1.msra.mxu0 %v686
        %972 = vmatprep.subr.mxu0 0.0
        %973 = vmatpush1.msra.mxu0 %v689
        %974 = vmatprep.subr.mxu0 0.0
        %975 = vmatpush1.msra.mxu0 %v692
        %976 = vmatprep.subr.mxu0 0.0
        %977 = vmatpush1.msra.mxu0 %v695
        %978 = vmatprep.subr.mxu0 0.0
        %979 = vmatpush1.msra.mxu0 0.0
        %980 = vmatprep.subr.mxu0 0.0
        %981 = vmatpush1.msra.mxu0 0.0
        %982 = vmatprep.subr.mxu0 0.0
        %983 = vmatpush1.msra.mxu0 0.0
        %984 = vmatprep.subr.mxu0 0.0
        %985 = vmatpush1.msra.mxu0 0.0
        %986 = vmatprep.subr.mxu0 0.0
        %987 = vmatpush1.msra.mxu0 0.0
        %988 = vmatprep.subr.mxu0 0.0
        %989 = vmatpush1.msra.mxu0 0.0
        %990 = vmatprep.subr.mxu0 0.0
        %991 = vmatpush1.msra.mxu0 0.0
        %992 = vmatprep.subr.mxu0 0.0
        %993 = vmatpush1.msra.mxu0 0.0
        %994 = vmatprep.subr.mxu0 0.0
        %995 = vmatpush1.msra.mxu0 0.0
        %996 = vmatprep.subr.mxu0 0.0
        %997 = vmatpush1.msra.mxu0 0.0
        %998 = vmatprep.subr.mxu0 0.0
        %999 = vmatpush1.msra.mxu0 0.0
        %1000 = vmatprep.subr.mxu0 0.0
        %1001 = vmatpush1.msra.mxu0 0.0
        %1002 = vmatprep.subr.mxu0 0.0
        %1003 = vmatpush1.msra.mxu0 0.0
        %1004 = vmatprep.subr.mxu0 0.0
        %1005 = vmatpush1.msra.mxu0 0.0
        %1006 = vmatprep.subr.mxu0 0.0
        %1007 = vmatpush1.msra.mxu0 0.0
        %1008 = vmatprep.subr.mxu0 0.0
        %1009 = vmatpush1.msra.mxu0 0.0
        %1010 = vmatprep.mubr.f32.mxu0 0.0
        %1011 = vmatmul.mubr.f32.gmra.mrb[0].mxu0 %v869
        %v1012 = vpop.f32.mrb[0].mxu0
        %v1013 = vadd.f32 0.0, %v1012
        %v1014 = vpop.f32.mrb[0].mxu0
        %1015 = vdwg.mxu0
        %v1016 = vadd.f32 %v872, %v942
        %v1017 = vxor.u32 %v1016, 2147483648
        %v1018 = vmul.f32 %v1017, 1.442695
        %v1019 = vpow.pop %v1018
        %v1020 = vadd.f32 %v1019, 1.0
        %v1021 = vrcp.pop %v1020
        %v1022 = vmul.f32 1.0, %v1021
        %v1023 = vadd.f32 %v873, %v944
        %v1024 = vxor.u32 %v1023, 2147483648
        %v1025 = vmul.f32 %v1024, 1.442695
        %v1026 = vpow.pop %v1025
        %v1027 = vadd.f32 %v1026, 1.0
        %v1028 = vrcp.pop %v1027
        %v1029 = vmul.f32 1.0, %v1028
        %v1030 = vadd.f32 %v1013, %v701
        %v1031 = vmul.f32 %v1022, %v1030
        %v1032 = vadd.f32 %v874, %v1031
        %v1033 = vtanh.pop %v1032
        %v1034 = vsub.f32 1.0, %v1029
        %v1035 = vmul.f32 %v1034, %v1033
        %v1036 = vmul.f32 %v1029, %v869
        %v1037 = vadd.f32 %v1035, %v1036
        %s1038 = scalar_lea.vmem [#allocation3], 8
        %1039 = vst [vmem:[%s1038] sm:$0xff] %v1037
        %s1040 = scalar_lea.vmem [#allocation2], 48
        %v1041 = vld [vmem:[%s1040] sm:$0xff]
        %v1042 = vld [vmem:[%s1040 + $0x8] sm:$0xff]
        %v1043 = vld [vmem:[%s1040 + $0x10] sm:$0xff]
        %1044 = vmatprep.subr.mxu0 %v649
        %1045 = vmatpush1.msra.mxu0 %v648
        %1046 = vmatprep.subr.mxu0 %v652
        %1047 = vmatpush1.msra.mxu0 %v651
        %1048 = vmatprep.subr.mxu0 %v655
        %1049 = vmatpush1.msra.mxu0 %v654
        %1050 = vmatprep.subr.mxu0 %v658
        %1051 = vmatpush1.msra.mxu0 %v657
        %1052 = vmatprep.subr.mxu0 %v661
        %1053 = vmatpush1.msra.mxu0 %v660
        %1054 = vmatprep.subr.mxu0 %v664
        %1055 = vmatpush1.msra.mxu0 %v663
        %1056 = vmatprep.subr.mxu0 %v667
        %1057 = vmatpush1.msra.mxu0 %v666
        %1058 = vmatprep.subr.mxu0 %v670
        %1059 = vmatpush1.msra.mxu0 %v669
        %1060 = vmatprep.subr.mxu0 %v673
        %1061 = vmatpush1.msra.mxu0 %v672
        %1062 = vmatprep.subr.mxu0 %v676
        %1063 = vmatpush1.msra.mxu0 %v675
        %1064 = vmatprep.subr.mxu0 %v679
        %1065 = vmatpush1.msra.mxu0 %v678
        %1066 = vmatprep.subr.mxu0 %v682
        %1067 = vmatpush1.msra.mxu0 %v681
        %1068 = vmatprep.subr.mxu0 %v685
        %1069 = vmatpush1.msra.mxu0 %v684
        %1070 = vmatprep.subr.mxu0 %v688
        %1071 = vmatpush1.msra.mxu0 %v687
        %1072 = vmatprep.subr.mxu0 %v691
        %1073 = vmatpush1.msra.mxu0 %v690
        %1074 = vmatprep.subr.mxu0 %v694
        %1075 = vmatpush1.msra.mxu0 %v693
        %1076 = vmatprep.subr.mxu0 0.0
        %1077 = vmatpush1.msra.mxu0 0.0
        %1078 = vmatprep.subr.mxu0 0.0
        %1079 = vmatpush1.msra.mxu0 0.0
        %1080 = vmatprep.subr.mxu0 0.0
        %1081 = vmatpush1.msra.mxu0 0.0
        %1082 = vmatprep.subr.mxu0 0.0
        %1083 = vmatpush1.msra.mxu0 0.0
        %1084 = vmatprep.subr.mxu0 0.0
        %1085 = vmatpush1.msra.mxu0 0.0
        %1086 = vmatprep.subr.mxu0 0.0
        %1087 = vmatpush1.msra.mxu0 0.0
        %1088 = vmatprep.subr.mxu0 0.0
        %1089 = vmatpush1.msra.mxu0 0.0
        %1090 = vmatprep.subr.mxu0 0.0
        %1091 = vmatpush1.msra.mxu0 0.0
        %1092 = vmatprep.subr.mxu0 0.0
        %1093 = vmatpush1.msra.mxu0 0.0
        %1094 = vmatprep.subr.mxu0 0.0
        %1095 = vmatpush1.msra.mxu0 0.0
        %1096 = vmatprep.subr.mxu0 0.0
        %1097 = vmatpush1.msra.mxu0 0.0
        %1098 = vmatprep.subr.mxu0 0.0
        %1099 = vmatpush1.msra.mxu0 0.0
        %1100 = vmatprep.subr.mxu0 0.0
        %1101 = vmatpush1.msra.mxu0 0.0
        %1102 = vmatprep.subr.mxu0 0.0
        %1103 = vmatpush1.msra.mxu0 0.0
        %1104 = vmatprep.subr.mxu0 0.0
        %1105 = vmatpush1.msra.mxu0 0.0
        %1106 = vmatprep.subr.mxu0 0.0
        %1107 = vmatpush1.msra.mxu0 0.0
        %1108 = vmatprep.mubr.f32.mxu0 0.0
        %1109 = vmatmul.mubr.f32.gmra.mrb[0].mxu0 %v1037
        %v1110 = vpop.f32.mrb[0].mxu0
        %v1111 = vadd.f32 0.0, %v1110
        %v1112 = vpop.f32.mrb[0].mxu0
        %v1113 = vadd.f32 0.0, %v1112
        %1114 = vdwg.mxu0
        %1115 = vmatprep.subr.mxu0 0.0
        %1116 = vmatpush1.msra.mxu0 %v650
        %1117 = vmatprep.subr.mxu0 0.0
        %1118 = vmatpush1.msra.mxu0 %v653
        %1119 = vmatprep.subr.mxu0 0.0
        %1120 = vmatpush1.msra.mxu0 %v656
        %1121 = vmatprep.subr.mxu0 0.0
        %1122 = vmatpush1.msra.mxu0 %v659
        %1123 = vmatprep.subr.mxu0 0.0
        %1124 = vmatpush1.msra.mxu0 %v662
        %1125 = vmatprep.subr.mxu0 0.0
        %1126 = vmatpush1.msra.mxu0 %v665
        %1127 = vmatprep.subr.mxu0 0.0
        %1128 = vmatpush1.msra.mxu0 %v668
        %1129 = vmatprep.subr.mxu0 0.0
        %1130 = vmatpush1.msra.mxu0 %v671
        %1131 = vmatprep.subr.mxu0 0.0
        %1132 = vmatpush1.msra.mxu0 %v674
        %1133 = vmatprep.subr.mxu0 0.0
        %1134 = vmatpush1.msra.mxu0 %v677
        %1135 = vmatprep.subr.mxu0 0.0
        %1136 = vmatpush1.msra.mxu0 %v680
        %1137 = vmatprep.subr.mxu0 0.0
        %1138 = vmatpush1.msra.mxu0 %v683
        %1139 = vmatprep.subr.mxu0 0.0
        %1140 = vmatpush1.msra.mxu0 %v686
        %1141 = vmatprep.subr.mxu0 0.0
        %1142 = vmatpush1.msra.mxu0 %v689
        %1143 = vmatprep.subr.mxu0 0.0
        %1144 = vmatpush1.msra.mxu0 %v692
        %1145 = vmatprep.subr.mxu0 0.0
        %1146 = vmatpush1.msra.mxu0 %v695
        %1147 = vmatprep.subr.mxu0 0.0
        %1148 = vmatpush1.msra.mxu0 0.0
        %1149 = vmatprep.subr.mxu0 0.0
        %1150 = vmatpush1.msra.mxu0 0.0
        %1151 = vmatprep.subr.mxu0 0.0
        %1152 = vmatpush1.msra.mxu0 0.0
        %1153 = vmatprep.subr.mxu0 0.0
        %1154 = vmatpush1.msra.mxu0 0.0
        %1155 = vmatprep.subr.mxu0 0.0
        %1156 = vmatpush1.msra.mxu0 0.0
        %1157 = vmatprep.subr.mxu0 0.0
        %1158 = vmatpush1.msra.mxu0 0.0
        %1159 = vmatprep.subr.mxu0 0.0
        %1160 = vmatpush1.msra.mxu0 0.0
        %1161 = vmatprep.subr.mxu0 0.0
        %1162 = vmatpush1.msra.mxu0 0.0
        %1163 = vmatprep.subr.mxu0 0.0
        %1164 = vmatpush1.msra.mxu0 0.0
        %1165 = vmatprep.subr.mxu0 0.0
        %1166 = vmatpush1.msra.mxu0 0.0
        %1167 = vmatprep.subr.mxu0 0.0
        %1168 = vmatpush1.msra.mxu0 0.0
        %1169 = vmatprep.subr.mxu0 0.0
        %1170 = vmatpush1.msra.mxu0 0.0
        %1171 = vmatprep.subr.mxu0 0.0
        %1172 = vmatpush1.msra.mxu0 0.0
        %1173 = vmatprep.subr.mxu0 0.0
        %1174 = vmatpush1.msra.mxu0 0.0
        %1175 = vmatprep.subr.mxu0 0.0
        %1176 = vmatpush1.msra.mxu0 0.0
        %1177 = vmatprep.subr.mxu0 0.0
        %1178 = vmatpush1.msra.mxu0 0.0
        %1179 = vmatprep.mubr.f32.mxu0 0.0
        %1180 = vmatmul.mubr.f32.gmra.mrb[0].mxu0 %v1037
        %v1181 = vpop.f32.mrb[0].mxu0
        %v1182 = vadd.f32 0.0, %v1181
        %v1183 = vpop.f32.mrb[0].mxu0
        %1184 = vdwg.mxu0
        %v1185 = vadd.f32 %v1041, %v1111
        %v1186 = vxor.u32 %v1185, 2147483648
        %v1187 = vmul.f32 %v1186, 1.442695
        %v1188 = vpow.pop %v1187
        %v1189 = vadd.f32 %v1188, 1.0
        %v1190 = vrcp.pop %v1189
        %v1191 = vmul.f32 1.0, %v1190
        %v1192 = vadd.f32 %v1042, %v1113
        %v1193 = vxor.u32 %v1192, 2147483648
        %v1194 = vmul.f32 %v1193, 1.442695
        %v1195 = vpow.pop %v1194
        %v1196 = vadd.f32 %v1195, 1.0
        %v1197 = vrcp.pop %v1196
        %v1198 = vmul.f32 1.0, %v1197
        %v1199 = vadd.f32 %v1182, %v701
        %v1200 = vmul.f32 %v1191, %v1199
        %v1201 = vadd.f32 %v1043, %v1200
        %v1202 = vtanh.pop %v1201
        %v1203 = vsub.f32 1.0, %v1198
        %v1204 = vmul.f32 %v1203, %v1202
        %v1205 = vmul.f32 %v1198, %v1037
        %v1206 = vadd.f32 %v1204, %v1205
        %s1207 = scalar_lea.vmem [#allocation3], 16
        %1208 = vst [vmem:[%s1207] sm:$0xff] %v1206
        %s1209 = scalar_lea.vmem [#allocation2], 72
        %v1210 = vld [vmem:[%s1209] sm:$0xff]
        %v1211 = vld [vmem:[%s1209 + $0x8] sm:$0xff]
        %v1212 = vld [vmem:[%s1209 + $0x10] sm:$0xff]
        %1213 = vmatprep.subr.mxu0 %v649
        %1214 = vmatpush1.msra.mxu0 %v648
        %1215 = vmatprep.subr.mxu0 %v652
        %1216 = vmatpush1.msra.mxu0 %v651
        %1217 = vmatprep.subr.mxu0 %v655
        %1218 = vmatpush1.msra.mxu0 %v654
        %1219 = vmatprep.subr.mxu0 %v658
        %1220 = vmatpush1.msra.mxu0 %v657
        %1221 = vmatprep.subr.mxu0 %v661
        %1222 = vmatpush1.msra.mxu0 %v660
        %1223 = vmatprep.subr.mxu0 %v664
        %1224 = vmatpush1.msra.mxu0 %v663
        %1225 = vmatprep.subr.mxu0 %v667
        %1226 = vmatpush1.msra.mxu0 %v666
        %1227 = vmatprep.subr.mxu0 %v670
        %1228 = vmatpush1.msra.mxu0 %v669
        %1229 = vmatprep.subr.mxu0 %v673
        %1230 = vmatpush1.msra.mxu0 %v672
        %1231 = vmatprep.subr.mxu0 %v676
        %1232 = vmatpush1.msra.mxu0 %v675
        %1233 = vmatprep.subr.mxu0 %v679
        %1234 = vmatpush1.msra.mxu0 %v678
        %1235 = vmatprep.subr.mxu0 %v682
        %1236 = vmatpush1.msra.mxu0 %v681
        %1237 = vmatprep.subr.mxu0 %v685
        %1238 = vmatpush1.msra.mxu0 %v684
        %1239 = vmatprep.subr.mxu0 %v688
        %1240 = vmatpush1.msra.mxu0 %v687
        %1241 = vmatprep.subr.mxu0 %v691
        %1242 = vmatpush1.msra.mxu0 %v690
        %1243 = vmatprep.subr.mxu0 %v694
        %1244 = vmatpush1.msra.mxu0 %v693
        %1245 = vmatprep.subr.mxu0 0.0
        %1246 = vmatpush1.msra.mxu0 0.0
        %1247 = vmatprep.subr.mxu0 0.0
        %1248 = vmatpush1.msra.mxu0 0.0
        %1249 = vmatprep.subr.mxu0 0.0
        %1250 = vmatpush1.msra.mxu0 0.0
        %1251 = vmatprep.subr.mxu0 0.0
        %1252 = vmatpush1.msra.mxu0 0.0
        %1253 = vmatprep.subr.mxu0 0.0
        %1254 = vmatpush1.msra.mxu0 0.0
        %1255 = vmatprep.subr.mxu0 0.0
        %1256 = vmatpush1.msra.mxu0 0.0
        %1257 = vmatprep.subr.mxu0 0.0
        %1258 = vmatpush1.msra.mxu0 0.0
        %1259 = vmatprep.subr.mxu0 0.0
        %1260 = vmatpush1.msra.mxu0 0.0
        %1261 = vmatprep.subr.mxu0 0.0
        %1262 = vmatpush1.msra.mxu0 0.0
        %1263 = vmatprep.subr.mxu0 0.0
        %1264 = vmatpush1.msra.mxu0 0.0
        %1265 = vmatprep.subr.mxu0 0.0
        %1266 = vmatpush1.msra.mxu0 0.0
        %1267 = vmatprep.subr.mxu0 0.0
        %1268 = vmatpush1.msra.mxu0 0.0
        %1269 = vmatprep.subr.mxu0 0.0
        %1270 = vmatpush1.msra.mxu0 0.0
        %1271 = vmatprep.subr.mxu0 0.0
        %1272 = vmatpush1.msra.mxu0 0.0
        %1273 = vmatprep.subr.mxu0 0.0
        %1274 = vmatpush1.msra.mxu0 0.0
        %1275 = vmatprep.subr.mxu0 0.0
        %1276 = vmatpush1.msra.mxu0 0.0
        %1277 = vmatprep.mubr.f32.mxu0 0.0
        %1278 = vmatmul.mubr.f32.gmra.mrb[0].mxu0 %v1206
        %v1279 = vpop.f32.mrb[0].mxu0
        %v1280 = vadd.f32 0.0, %v1279
        %v1281 = vpop.f32.mrb[0].mxu0
        %v1282 = vadd.f32 0.0, %v1281
        %1283 = vdwg.mxu0
        %1284 = vmatprep.subr.mxu0 0.0
        %1285 = vmatpush1.msra.mxu0 %v650
        %1286 = vmatprep.subr.mxu0 0.0
        %1287 = vmatpush1.msra.mxu0 %v653
        %1288 = vmatprep.subr.mxu0 0.0
        %1289 = vmatpush1.msra.mxu0 %v656
        %1290 = vmatprep.subr.mxu0 0.0
        %1291 = vmatpush1.msra.mxu0 %v659
        %1292 = vmatprep.subr.mxu0 0.0
        %1293 = vmatpush1.msra.mxu0 %v662
        %1294 = vmatprep.subr.mxu0 0.0
        %1295 = vmatpush1.msra.mxu0 %v665
        %1296 = vmatprep.subr.mxu0 0.0
        %1297 = vmatpush1.msra.mxu0 %v668
        %1298 = vmatprep.subr.mxu0 0.0
        %1299 = vmatpush1.msra.mxu0 %v671
        %1300 = vmatprep.subr.mxu0 0.0
        %1301 = vmatpush1.msra.mxu0 %v674
        %1302 = vmatprep.subr.mxu0 0.0
        %1303 = vmatpush1.msra.mxu0 %v677
        %1304 = vmatprep.subr.mxu0 0.0
        %1305 = vmatpush1.msra.mxu0 %v680
        %1306 = vmatprep.subr.mxu0 0.0
        %1307 = vmatpush1.msra.mxu0 %v683
        %1308 = vmatprep.subr.mxu0 0.0
        %1309 = vmatpush1.msra.mxu0 %v686
        %1310 = vmatprep.subr.mxu0 0.0
        %1311 = vmatpush1.msra.mxu0 %v689
        %1312 = vmatprep.subr.mxu0 0.0
        %1313 = vmatpush1.msra.mxu0 %v692
        %1314 = vmatprep.subr.mxu0 0.0
        %1315 = vmatpush1.msra.mxu0 %v695
        %1316 = vmatprep.subr.mxu0 0.0
        %1317 = vmatpush1.msra.mxu0 0.0
        %1318 = vmatprep.subr.mxu0 0.0
        %1319 = vmatpush1.msra.mxu0 0.0
        %1320 = vmatprep.subr.mxu0 0.0
        %1321 = vmatpush1.msra.mxu0 0.0
        %1322 = vmatprep.subr.mxu0 0.0
        %1323 = vmatpush1.msra.mxu0 0.0
        %1324 = vmatprep.subr.mxu0 0.0
        %1325 = vmatpush1.msra.mxu0 0.0
        %1326 = vmatprep.subr.mxu0 0.0
        %1327 = vmatpush1.msra.mxu0 0.0
        %1328 = vmatprep.subr.mxu0 0.0
        %1329 = vmatpush1.msra.mxu0 0.0
        %1330 = vmatprep.subr.mxu0 0.0
        %1331 = vmatpush1.msra.mxu0 0.0
        %1332 = vmatprep.subr.mxu0 0.0
        %1333 = vmatpush1.msra.mxu0 0.0
        %1334 = vmatprep.subr.mxu0 0.0
        %1335 = vmatpush1.msra.mxu0 0.0
        %1336 = vmatprep.subr.mxu0 0.0
        %1337 = vmatpush1.msra.mxu0 0.0
        %1338 = vmatprep.subr.mxu0 0.0
        %1339 = vmatpush1.msra.mxu0 0.0
        %1340 = vmatprep.subr.mxu0 0.0
        %1341 = vmatpush1.msra.mxu0 0.0
        %1342 = vmatprep.subr.mxu0 0.0
        %1343 = vmatpush1.msra.mxu0 0.0
        %1344 = vmatprep.subr.mxu0 0.0
        %1345 = vmatpush1.msra.mxu0 0.0
        %1346 = vmatprep.subr.mxu0 0.0
        %1347 = vmatpush1.msra.mxu0 0.0
        %1348 = vmatprep.mubr.f32.mxu0 0.0
        %1349 = vmatmul.mubr.f32.gmra.mrb[0].mxu0 %v1206
        %v1350 = vpop.f32.mrb[0].mxu0
        %v1351 = vadd.f32 0.0, %v1350
        %v1352 = vpop.f32.mrb[0].mxu0
        %1353 = vdwg.mxu0
        %v1354 = vadd.f32 %v1210, %v1280
        %v1355 = vxor.u32 %v1354, 2147483648
        %v1356 = vmul.f32 %v1355, 1.442695
        %v1357 = vpow.pop %v1356
        %v1358 = vadd.f32 %v1357, 1.0
        %v1359 = vrcp.pop %v1358
        %v1360 = vmul.f32 1.0, %v1359
        %v1361 = vadd.f32 %v1211, %v1282
        %v1362 = vxor.u32 %v1361, 2147483648
        %v1363 = vmul.f32 %v1362, 1.442695
        %v1364 = vpow.pop %v1363
        %v1365 = vadd.f32 %v1364, 1.0
        %v1366 = vrcp.pop %v1365
        %v1367 = vmul.f32 1.0, %v1366
        %v1368 = vadd.f32 %v1351, %v701
        %v1369 = vmul.f32 %v1360, %v1368
        %v1370 = vadd.f32 %v1212, %v1369
        %v1371 = vtanh.pop %v1370
        %v1372 = vsub.f32 1.0, %v1367
        %v1373 = vmul.f32 %v1372, %v1371
        %v1374 = vmul.f32 %v1367, %v1206
        %v1375 = vadd.f32 %v1373, %v1374
        %s1376 = scalar_lea.vmem [#allocation3], 24
        %1377 = vst [vmem:[%s1376] sm:$0xff] %v1375
        %1378 = vst [vmem:[#allocation4] sm:$0xff] %v1375
        %1379 = vst [vmem:[#allocation11] sm:$0xff] %v1375
        %v1380 = vld [vmem:[#allocation3] sm:$0xff]
        %v1381 = vld [vmem:[#allocation3 + $0x8] sm:$0xff]
        %v1382 = vld [vmem:[#allocation3 + $0x10] sm:$0xff]
        %v1383 = vld [vmem:[#allocation3 + $0x18] sm:$0xff]
        %v1384 = vld [vmem:[#allocation8] sm:$0xff]
        %v1385 = vld [vmem:[#allocation8 + $0x8] sm:$0xff]
        %v1386 = vld [vmem:[#allocation8 + $0x10] sm:$0xff]
        %v1387 = vld [vmem:[#allocation8 + $0x18] sm:$0xff]
        %v1388 = vld [vmem:[#allocation8 + $0x20] sm:$0xff]
        %v1389 = vld [vmem:[#allocation8 + $0x28] sm:$0xff]
        %v1390 = vld [vmem:[#allocation8 + $0x30] sm:$0xff]
        %v1391 = vld [vmem:[#allocation8 + $0x38] sm:$0xff]
        %v1392 = vld [vmem:[#allocation8 + $0x40] sm:$0xff]
        %v1393 = vld [vmem:[#allocation8 + $0x48] sm:$0xff]
        %v1394 = vld [vmem:[#allocation8 + $0x50] sm:$0xff]
        %v1395 = vld [vmem:[#allocation8 + $0x58] sm:$0xff]
        %v1396 = vld [vmem:[#allocation8 + $0x60] sm:$0xff]
        %v1397 = vld [vmem:[#allocation8 + $0x68] sm:$0xff]
        %v1398 = vld [vmem:[#allocation8 + $0x70] sm:$0xff]
        %v1399 = vld [vmem:[#allocation8 + $0x78] sm:$0xff]
        %v1400 = vld [vmem:[%s7] sm:$0x1]
        %v1402 = vlaneseq
        %v1403 = vshrl.u32 %v1402, 7
        %v1404 = vsub.s32 0, %v1403
        %v1405 = vrot.slane %v1400, %v1404
        %1407 = vmatprep.subr.mxu0 0.0
        %1408 = vmatpush1.msra.mxu0 %v1384
        %1409 = vmatprep.subr.mxu0 0.0
        %1410 = vmatpush1.msra.mxu0 %v1385
        %1411 = vmatprep.subr.mxu0 0.0
        %1412 = vmatpush1.msra.mxu0 %v1386
        %1413 = vmatprep.subr.mxu0 0.0
        %1414 = vmatpush1.msra.mxu0 %v1387
        %1415 = vmatprep.subr.mxu0 0.0
        %1416 = vmatpush1.msra.mxu0 %v1388
        %1417 = vmatprep.subr.mxu0 0.0
        %1418 = vmatpush1.msra.mxu0 %v1389
        %1419 = vmatprep.subr.mxu0 0.0
        %1420 = vmatpush1.msra.mxu0 %v1390
        %1421 = vmatprep.subr.mxu0 0.0
        %1422 = vmatpush1.msra.mxu0 %v1391
        %1423 = vmatprep.subr.mxu0 0.0
        %1424 = vmatpush1.msra.mxu0 %v1392
        %1425 = vmatprep.subr.mxu0 0.0
        %1426 = vmatpush1.msra.mxu0 %v1393
        %1427 = vmatprep.subr.mxu0 0.0
        %1428 = vmatpush1.msra.mxu0 %v1394
        %1429 = vmatprep.subr.mxu0 0.0
        %1430 = vmatpush1.msra.mxu0 %v1395
        %1431 = vmatprep.subr.mxu0 0.0
        %1432 = vmatpush1.msra.mxu0 %v1396
        %1433 = vmatprep.subr.mxu0 0.0
        %1434 = vmatpush1.msra.mxu0 %v1397
        %1435 = vmatprep.subr.mxu0 0.0
        %1436 = vmatpush1.msra.mxu0 %v1398
        %1437 = vmatprep.subr.mxu0 0.0
        %1438 = vmatpush1.msra.mxu0 %v1399
        %1439 = vmatprep.subr.mxu0 0.0
        %1440 = vmatpush1.msra.mxu0 0.0
        %1441 = vmatprep.subr.mxu0 0.0
        %1442 = vmatpush1.msra.mxu0 0.0
        %1443 = vmatprep.subr.mxu0 0.0
        %1444 = vmatpush1.msra.mxu0 0.0
        %1445 = vmatprep.subr.mxu0 0.0
        %1446 = vmatpush1.msra.mxu0 0.0
        %1447 = vmatprep.subr.mxu0 0.0
        %1448 = vmatpush1.msra.mxu0 0.0
        %1449 = vmatprep.subr.mxu0 0.0
        %1450 = vmatpush1.msra.mxu0 0.0
        %1451 = vmatprep.subr.mxu0 0.0
        %1452 = vmatpush1.msra.mxu0 0.0
        %1453 = vmatprep.subr.mxu0 0.0
        %1454 = vmatpush1.msra.mxu0 0.0
        %1455 = vmatprep.subr.mxu0 0.0
        %1456 = vmatpush1.msra.mxu0 0.0
        %1457 = vmatprep.subr.mxu0 0.0
        %1458 = vmatpush1.msra.mxu0 0.0
        %1459 = vmatprep.subr.mxu0 0.0
        %1460 = vmatpush1.msra.mxu0 0.0
        %1461 = vmatprep.subr.mxu0 0.0
        %1462 = vmatpush1.msra.mxu0 0.0
        %1463 = vmatprep.subr.mxu0 0.0
        %1464 = vmatpush1.msra.mxu0 0.0
        %1465 = vmatprep.subr.mxu0 0.0
        %1466 = vmatpush1.msra.mxu0 0.0
        %1467 = vmatprep.subr.mxu0 0.0
        %1468 = vmatpush1.msra.mxu0 0.0
        %1469 = vmatprep.subr.mxu0 0.0
        %1470 = vmatpush1.msra.mxu0 0.0
        %1471 = vmatprep.mubr.f32.mxu0 0.0
        %1472 = vmatmul.mubr.f32.gmra.mrb[0].mxu0 %v1380
        %v1473 = vpop.f32.mrb[0].mxu0
        %v1474 = vadd.f32 %v1405, %v1473
        %v1475 = vpop.f32.mrb[0].mxu0
        %1476 = vmatprep.mubr.f32.mxu0 0.0
        %1477 = vmatmul.mubr.f32.gmra.mrb[0].mxu0 %v1381
        %v1478 = vpop.f32.mrb[0].mxu0
        %v1479 = vadd.f32 %v1405, %v1478
        %v1480 = vpop.f32.mrb[0].mxu0
        %1481 = vmatprep.mubr.f32.mxu0 0.0
        %1482 = vmatmul.mubr.f32.gmra.mrb[0].mxu0 %v1382
        %v1483 = vpop.f32.mrb[0].mxu0
        %v1484 = vadd.f32 %v1405, %v1483
        %v1485 = vpop.f32.mrb[0].mxu0
        %1486 = vmatprep.mubr.f32.mxu0 0.0
        %1487 = vmatmul.mubr.f32.gmra.mrb[0].mxu0 %v1383
        %v1488 = vpop.f32.mrb[0].mxu0
        %v1489 = vadd.f32 %v1405, %v1488
        %v1490 = vpop.f32.mrb[0].mxu0
        %1491 = vdwg.mxu0
        %1492 = vst [vmem:[%s393] sm:$0xff] %v1474
        %1493 = vst [vmem:[%s393 + $0x8] sm:$0xff] %v1479
        %1494 = vst [vmem:[%s393 + $0x10] sm:$0xff] %v1484
        %1495 = vst [vmem:[%s393 + $0x18] sm:$0xff] %v1489
        %s1496 = sand.u32 %s229, 1
        %s1497 = scalar_lea.sflag [#allocation7], %s1496
        %s1498 = sand.u32 %s229, 1
        %s1499 = smul.addr %s1498, 32
        %s1500 = scalar_lea.vmem [#allocation10], %s1499
        // Predicated region
        $region65: #{tpu_custom_call.1} parent=51 // pred_check
          %p1501 = pneg %p239
        $region66: #{tpu_custom_call.1} parent=51 // pred_check_branch
          %1503 = sbr.rel (%p1501) target = $region68
        $region67: #{tpu_custom_call.1} parent=51 // pred_region
          %s1504 = smul.u32 4, %s32
          %s1506 = ssub.s32 512, 512
          %1507 = vsyncadd %s1497, %s1506
          %s1508 = sadd.s32 %s31, %s1504
          %s1509 = smul.addr %s1508, 128
          %s1510 = scalar_lea.hbm %s8, %s1509
          %s1511 = sshll.u32 %s1500, 4
          %s1512 = int_to_ptr.vmem [resolvable:$true] %s1511
          %1517 = dma.vmem_to_hbm [thread:$0]  %s1512, 512, %s1510, %s1497, 128, 128, 8
        $region68: #{tpu_custom_call.1} parent=51 // pred_fallthru
          _
        // Predicated region
        $region69: #{tpu_custom_call.1} parent=51 // pred_check
          %p1518 = pneg %p265
        $region70: #{tpu_custom_call.1} parent=51 // pred_check_branch
          %1520 = sbr.rel (%p1518) target = $region72
        $region71: #{tpu_custom_call.1} parent=51 // pred_region
          %s1522 = ssub.s32 128, 128
          %1523 = vsyncadd [#allocation12], %s1522
          %s1524 = smul.addr %s31, 128
          %s1525 = scalar_lea.hbm %s9, %s1524
          %s1527 = sshll.u32 [#allocation11], 4
          %s1528 = int_to_ptr.vmem [resolvable:$true] %s1527
          %1530 = dma.vmem_to_hbm [thread:$0]  %s1528, 128, %s1525, [#allocation12]
        $region72: #{tpu_custom_call.1} parent=51 // pred_fallthru
          _
        // Predicated region
        $region73: #{tpu_custom_call.1} parent=51 // pred_check
          %p1531 = pneg %p265
        $region74: #{tpu_custom_call.1} parent=51 // pred_check_branch
          %1533 = sbr.rel (%p1531) target = $region76
        $region75: #{tpu_custom_call.1} parent=51 // pred_region
          %1534 = dma.done [#allocation12], 128
        $region76: #{tpu_custom_call.1} parent=51 // pred_fallthru
          _
      $region52: #{tpu_custom_call.1} parent=5 // pred_fallthru
        _
      %p1535 = scmp.le.s32.totalorder 2, %s22
      // Predicated region
      $region77: #{tpu_custom_call.1} parent=5 // pred_check
        %p1536 = pneg %p1535
      $region78: #{tpu_custom_call.1} parent=5 // pred_check_branch
        %1538 = sbr.rel (%p1536) target = $region80
      $region79: #{tpu_custom_call.1} parent=5 // pred_region
        %s1539 = ssub.s32 %s22, 2
        // Predicated region
        $region81: #{tpu_custom_call.1} parent=79 // pred_check
          %p1540 = pneg %p245
        $region82: #{tpu_custom_call.1} parent=79 // pred_check_branch
          %1542 = sbr.rel (%p1540) target = $region84
        $region83: #{tpu_custom_call.1} parent=79 // pred_region
          %s1543 = sand.u32 %s230, 1
          %s1544 = scalar_lea.sflag [#allocation7], %s1543
          %s1545 = sand.u32 %s230, 1
          %s1546 = smul.addr %s1545, 32
          %s1547 = scalar_lea.vmem [#allocation10], %s1546
          %1548 = dma.done %s1544, 512
        $region84: #{tpu_custom_call.1} parent=79 // pred_fallthru
          _
      $region80: #{tpu_custom_call.1} parent=5 // pred_fallthru
        _
    $region6: #{tpu_custom_call.1} parent=1 // loop_footer
      %s26 = sadd.s32 1, %s22
    $region7: #{tpu_custom_call.1} parent=1 // loop_footer_branch
      %21 = sbr.rel target = $region3
    $region8: #{tpu_custom_call.1} parent=1 // loop_exit
      _
    %1549 = vsyncpa [#allocation6], 1
    %s1550 = scalar_lea.sflag [#allocation6], 1
    %1551 = vsyncpa %s1550, 1
    %1552 = vsyncpa [#allocation9], 1
    %1553 = vsyncpa [#allocation7], 1
    %s1554 = scalar_lea.sflag [#allocation7], 1
    %1555 = vsyncpa %s1554, 1
    %1556 = vsyncpa [#allocation12], 1

</llo_original>
